<compile_context>
chip_gen: v7x
topology: tpu7x:2x2x1
jax: 0.10.0
libtpu: 0.0.40
codegen_flags: <defaults>
</compile_context>

<pallas_src>
import functools

import jax
import jax.numpy as jnp
from jax import lax
from jax.experimental import pallas as pl
from jax.experimental.pallas import tpu as pltpu

EPS = 1e-5
_LANE = 128
_VMEM_LIMIT = 64 * 1024 * 1024


def _round_up(x, m):
    return (x + m - 1) // m * m


# ----------------------------- Pallas kernels ------------------------------ #
def _gemm_partials_kernel(lhs_ref, rhs_ref, y_ref, s_ref, q_ref, acc_ref):
    """Tiled GEMM (bf16 in, f32 accumulate) with BN-statistics epilogue.

    At the last K step writes the f32 output tile plus this M-tile's column
    sum and sum-of-squares (broadcast over 8 sublanes for a lane-dense store).
    """
    k = pl.program_id(2)

    @pl.when(k == 0)
    def _init():
        acc_ref[...] = jnp.zeros_like(acc_ref)

    acc_ref[...] += jnp.dot(lhs_ref[...], rhs_ref[...],
                            preferred_element_type=jnp.float32)

    @pl.when(k == pl.num_programs(2) - 1)
    def _finalize():
        acc = acc_ref[...]
        y_ref[...] = acc
        col_sum = jnp.sum(acc, axis=0, keepdims=True)
        col_sq = jnp.sum(acc * acc, axis=0, keepdims=True)
        s_ref[...] = jnp.broadcast_to(col_sum, s_ref.shape)
        q_ref[...] = jnp.broadcast_to(col_sq, q_ref.shape)


def _bn_act_kernel(y_ref, scale_ref, shift_ref, o_ref, *, relu):
    y = y_ref[...] * scale_ref[...] + shift_ref[...]
    if relu:
        y = jnp.maximum(y, 0.0)
    o_ref[...] = y.astype(o_ref.dtype)


def _bn_add_relu_kernel(y_ref, scale_ref, shift_ref,
                        r_ref, rscale_ref, rshift_ref, o_ref):
    y = y_ref[...] * scale_ref[...] + shift_ref[...]
    r = r_ref[...] * rscale_ref[...] + rshift_ref[...]
    o_ref[...] = jnp.maximum(y + r, 0.0).astype(o_ref.dtype)


# ------------------------------ kernel wrappers ----------------------------- #
def _gemm_with_stats(lhs, rhs, tm, tn):
    """lhs (Mp, Kp) bf16, rhs (Kp, Cp) bf16 -> (y f32, col-sum parts, col-sq parts)."""
    Mp, Kp = lhs.shape
    Kp2, Cp = rhs.shape
    assert Kp == Kp2
    gm, gn = Mp // tm, Cp // tn
    tk = max(t for t in (512, 256, 128) if Kp % t == 0)
    gk = Kp // tk
    y, s, q = pl.pallas_call(
        _gemm_partials_kernel,
        grid=(gm, gn, gk),
        in_specs=[pl.BlockSpec((tm, tk), lambda i, j, k: (i, k)),
                  pl.BlockSpec((tk, tn), lambda i, j, k: (k, j))],
        out_specs=[pl.BlockSpec((tm, tn), lambda i, j, k: (i, j)),
                   pl.BlockSpec((8, tn), lambda i, j, k: (i, j)),
                   pl.BlockSpec((8, tn), lambda i, j, k: (i, j))],
        out_shape=[jax.ShapeDtypeStruct((Mp, Cp), jnp.float32),
                   jax.ShapeDtypeStruct((gm * 8, Cp), jnp.float32),
                   jax.ShapeDtypeStruct((gm * 8, Cp), jnp.float32)],
        scratch_shapes=[pltpu.VMEM((tm, tn), jnp.float32)],
        compiler_params=pltpu.CompilerParams(
            dimension_semantics=("parallel", "parallel", "arbitrary"),
            vmem_limit_bytes=_VMEM_LIMIT),
    )(lhs, rhs)
    return y, s, q


def _bn_apply(y, scale, shift, tm, tn, relu, out_dtype):
    Mp, Cp = y.shape
    gm, gn = Mp // tm, Cp // tn
    kern = functools.partial(_bn_act_kernel, relu=relu)
    return pl.pallas_call(
        kern,
        grid=(gm, gn),
        in_specs=[pl.BlockSpec((tm, tn), lambda i, j: (i, j)),
                  pl.BlockSpec((1, tn), lambda i, j: (0, j)),
                  pl.BlockSpec((1, tn), lambda i, j: (0, j))],
        out_specs=pl.BlockSpec((tm, tn), lambda i, j: (i, j)),
        out_shape=jax.ShapeDtypeStruct((Mp, Cp), out_dtype),
        compiler_params=pltpu.CompilerParams(
            dimension_semantics=("parallel", "parallel"),
            vmem_limit_bytes=_VMEM_LIMIT),
    )(y, scale, shift)


def _bn_add_relu(y, scale, shift, res, rscale, rshift, tm, tn):
    Mp, Cp = y.shape
    gm, gn = Mp // tm, Cp // tn
    return pl.pallas_call(
        _bn_add_relu_kernel,
        grid=(gm, gn),
        in_specs=[pl.BlockSpec((tm, tn), lambda i, j: (i, j)),
                  pl.BlockSpec((1, tn), lambda i, j: (0, j)),
                  pl.BlockSpec((1, tn), lambda i, j: (0, j)),
                  pl.BlockSpec((tm, tn), lambda i, j: (i, j)),
                  pl.BlockSpec((1, tn), lambda i, j: (0, j)),
                  pl.BlockSpec((1, tn), lambda i, j: (0, j))],
        out_specs=pl.BlockSpec((tm, tn), lambda i, j: (i, j)),
        out_shape=jax.ShapeDtypeStruct((Mp, Cp), jnp.float32),
        compiler_params=pltpu.CompilerParams(
            dimension_semantics=("parallel", "parallel"),
            vmem_limit_bytes=_VMEM_LIMIT),
    )(y, scale, shift, res, rscale, rshift)


# --------------------------------- glue ------------------------------------ #
def _im2col(x, k, stride, pad):
    """x: (N,H,W,C) -> patches (N*Ho*Wo, k*k*C) ordered (di, dj, c)."""
    N, H, W, C = x.shape
    xp = jnp.pad(x, ((0, 0), (pad, pad), (pad, pad), (0, 0)))
    Ho = (H + 2 * pad - k) // stride + 1
    Wo = (W + 2 * pad - k) // stride + 1
    cols = []
    for di in range(k):
        for dj in range(k):
            cols.append(xp[:, di:di + stride * Ho:stride,
                            dj:dj + stride * Wo:stride, :])
    patches = jnp.concatenate(cols, axis=-1)
    return patches.reshape(N * Ho * Wo, k * k * C), Ho, Wo


def _oihw_to_gemm(w_oihw):
    """(Cout, Cin, kh, kw) -> (kh*kw*Cin, Cout), matching _im2col ordering."""
    Cout, Cin, kh, kw = w_oihw.shape
    return jnp.transpose(w_oihw, (2, 3, 1, 0)).reshape(kh * kw * Cin, Cout)


def _pad2d(a, rows, cols):
    return jnp.pad(a, ((0, rows - a.shape[0]), (0, cols - a.shape[1])))


def _bn_coeffs(s_parts, q_parts, m_true, gamma, beta, Cp):
    """Finalize BN batch stats from per-M-tile partials -> (scale, shift)."""
    col_sum = jnp.sum(s_parts, axis=0) / 8.0   # each tile wrote 8 identical rows
    col_sq = jnp.sum(q_parts, axis=0) / 8.0
    mean = col_sum / m_true
    var = jnp.maximum(col_sq / m_true - mean * mean, 0.0)
    g = jnp.pad(gamma, (0, Cp - gamma.shape[0]))
    b = jnp.pad(beta, (0, Cp - beta.shape[0]))
    scale = g * lax.rsqrt(var + EPS)
    shift = b - mean * scale
    return scale.reshape(1, Cp), shift.reshape(1, Cp)


def init_params(key, in_channels, out_channels, stride):
    ks = jax.random.split(key, 3)
    params = {
        "w1": 0.1 * jax.random.normal(ks[0], (out_channels, in_channels, 3, 3), jnp.float32),
        "g1": jnp.ones((out_channels,), jnp.float32),
        "b1": jnp.zeros((out_channels,), jnp.float32),
        "w2": 0.1 * jax.random.normal(ks[1], (out_channels, out_channels, 3, 3), jnp.float32),
        "g2": jnp.ones((out_channels,), jnp.float32),
        "b2": jnp.zeros((out_channels,), jnp.float32),
    }
    if stride != 1 or in_channels != out_channels:
        params["wsc"] = 0.1 * jax.random.normal(
            ks[2], (out_channels, in_channels, 1, 1), jnp.float32)
        params["gsc"] = jnp.ones((out_channels,), jnp.float32)
        params["bsc"] = jnp.zeros((out_channels,), jnp.float32)
    return params


@functools.partial(jax.jit, static_argnames=("stride",))
def basic_block_std(x_nchw, params, stride):
    """Pallas implementation of BasicBlockStd.forward (training-mode BN)."""
    x = jnp.transpose(x_nchw, (0, 2, 3, 1)).astype(jnp.float32)  # NCHW -> NHWC
    N, H, W, Cin = x.shape
    Cout = params["w1"].shape[0]
    Ho = (H + 2 - 3) // stride + 1
    Wo = (W + 2 - 3) // stride + 1
    M = N * Ho * Wo
    Cp = _round_up(Cout, _LANE)
    tn = 256 if Cp % 256 == 0 else 128
    tm = min(512, _round_up(M, 16))
    Mp = _round_up(M, tm)

    def conv_bn(patches, w_oihw, gamma, beta):
        K = patches.shape[1]
        Kp = _round_up(K, _LANE)
        lhs = _pad2d(patches.astype(jnp.bfloat16), Mp, Kp)
        rhs = _pad2d(_oihw_to_gemm(w_oihw).astype(jnp.bfloat16), Kp, Cp)
        y, s, q = _gemm_with_stats(lhs, rhs, tm, tn)
        scale, shift = _bn_coeffs(s, q, M, gamma, beta, Cp)
        return y, scale, shift

    # conv1 (3x3, stride, pad 1) + bn1 + relu (activation kept in bf16)
    p1, _, _ = _im2col(x, 3, stride, 1)
    y1, scale1, shift1 = conv_bn(p1, params["w1"], params["g1"], params["b1"])
    a1 = _bn_apply(y1, scale1, shift1, tm, tn, relu=True, out_dtype=jnp.bfloat16)
    a1_img = a1[:M, :Cout].reshape(N, Ho, Wo, Cout)

    # conv2 (3x3, stride 1, pad 1) + bn2 statistics
    p2, _, _ = _im2col(a1_img, 3, 1, 1)
    y2, scale2, shift2 = conv_bn(p2, params["w2"], params["g2"], params["b2"])

    # shortcut (its BN + the residual add are fused into the final kernel)
    if stride != 1 or Cin != Cout:
        ps = x[:, ::stride, ::stride, :].reshape(M, Cin)
        res, rscale, rshift = conv_bn(ps, params["wsc"],
                                      params["gsc"], params["bsc"])
    else:
        res = _pad2d(x.reshape(M, Cin), Mp, Cp)
        rscale = jnp.ones((1, Cp), jnp.float32)
        rshift = jnp.zeros((1, Cp), jnp.float32)

    out = _bn_add_relu(y2, scale2, shift2, res, rscale, rshift, tm, tn)
    out_img = out[:M, :Cout].reshape(N, Ho, Wo, Cout)
    return jnp.transpose(out_img, (0, 3, 1, 2))  # NHWC -> NCHW


# ------------------------- pure-JAX reference check ------------------------ #
def _ref_block(x, params, stride):
    def conv(x, w, s, p):
        return lax.conv_general_dilated(
            x.astype(jnp.bfloat16), w.astype(jnp.bfloat16), (s, s),
            [(p, p), (p, p)],
            dimension_numbers=("NCHW", "OIHW", "NCHW"),
            preferred_element_type=jnp.float32)

    def bn(y, g, b):
        mean = y.mean(axis=(0, 2, 3), keepdims=True)
        var = jnp.square(y - mean).mean(axis=(0, 2, 3), keepdims=True)
        return ((y - mean) * lax.rsqrt(var + EPS) * g.reshape(1, -1, 1, 1)
                + b.reshape(1, -1, 1, 1))

    act1 = jnp.maximum(bn(conv(x, params["w1"], stride, 1),
                          params["g1"], params["b1"]), 0.0)
    out = bn(conv(act1, params["w2"], 1, 1), params["g2"], params["b2"])
    if "wsc" in params:
        sc = bn(conv(x, params["wsc"], stride, 0), params["gsc"], params["bsc"])
    else:
        sc = x
    return jnp.maximum(out + sc, 0.0)


# ----------------------------------- main ----------------------------------- #
if __name__ == "__main__":
    key = jax.random.PRNGKey(0)
    k_x, k_p1, k_p2 = jax.random.split(key, 3)

    x = jax.random.normal(k_x, (2, 4, 16, 16), jnp.float32)

    # Case 1: identity shortcut (in == out, stride == 1)
    params_id = init_params(k_p1, 4, 4, stride=1)
    out_id = jax.block_until_ready(basic_block_std(x, params_id, stride=1))
    ref_id = _ref_block(x, params_id, 1)
    assert out_id.shape == (2, 4, 16, 16)
    assert jnp.allclose(out_id, ref_id, rtol=1e-2, atol=1e-2), \
        float(jnp.max(jnp.abs(out_id - ref_id)))

    # Case 2: projection shortcut (in != out, stride == 2)
    params_pr = init_params(k_p2, 4, 8, stride=2)
    out_pr = jax.block_until_ready(basic_block_std(x, params_pr, stride=2))
    ref_pr = _ref_block(x, params_pr, 2)
    assert out_pr.shape == (2, 8, 8, 8)
    assert jnp.allclose(out_pr, ref_pr, rtol=1e-2, atol=1e-2), \
        float(jnp.max(jnp.abs(out_pr - ref_pr)))

    print("KERNEL_OK")
</pallas_src>

<mosaic_0001>
module attributes {stable_mosaic.version = 11 : i64} {
  func.func @_gemm_partials_kernel(%arg0: i32, %arg1: i32, %arg2: i32, %arg3: memref<512x128xbf16, #tpu.memory_space<vmem>>, %arg4: memref<128x128xbf16, #tpu.memory_space<vmem>>, %arg5: memref<512x128xf32, #tpu.memory_space<vmem>>, %arg6: memref<8x128xf32, #tpu.memory_space<vmem>>, %arg7: memref<8x128xf32, #tpu.memory_space<vmem>>, %arg8: memref<512x128xf32, #tpu.memory_space<vmem>>) attributes {dimension_semantics = [#tpu.dimension_semantics<parallel>, #tpu.dimension_semantics<parallel>, #tpu.dimension_semantics<arbitrary>], iteration_bounds = array<i64: 1, 1, 1>, scalar_prefetch = 0 : i64, scratch_operands = 1 : i64, tpu.core_type = #tpu.core_type<tc>, window_params = [{transform_indices = @transform_0, window_bounds = array<i64: 512, 128>}, {transform_indices = @transform_1, window_bounds = array<i64: 128, 128>}, {transform_indices = @transform_2, window_bounds = array<i64: 512, 128>}, {transform_indices = @transform_3, window_bounds = array<i64: 8, 128>}, {transform_indices = @transform_4, window_bounds = array<i64: 8, 128>}]} {
    %c0_i32 = arith.constant 0 : i32
    %0 = arith.cmpi eq, %arg2, %c0_i32 : i32
    %1 = arith.extui %0 : i1 to i32
    %c0_i32_0 = arith.constant 0 : i32
    %2 = arith.cmpi ne, %1, %c0_i32_0 : i32
    scf.if %2 {
      %cst_10 = arith.constant 0.000000e+00 : f32
      %12 = vector.broadcast %cst_10 : f32 to vector<512x128xf32>
      %c0_11 = arith.constant 0 : index
      %c0_12 = arith.constant 0 : index
      %13 = vector.load %arg8[%c0_11, %c0_12] : memref<512x128xf32, #tpu.memory_space<vmem>>, vector<512x128xf32>
      tpu.vector_store %arg8[%c0_11, %c0_12], %12 {strides = array<i32>} : memref<512x128xf32, #tpu.memory_space<vmem>>, vector<512x128xf32>,
    } else {
    }
    %c0 = arith.constant 0 : index
    %c0_1 = arith.constant 0 : index
    %3 = vector.load %arg8[%c0, %c0_1] : memref<512x128xf32, #tpu.memory_space<vmem>>, vector<512x128xf32>
    %c0_2 = arith.constant 0 : index
    %c0_3 = arith.constant 0 : index
    %4 = vector.load %arg3[%c0_2, %c0_3] : memref<512x128xbf16, #tpu.memory_space<vmem>>, vector<512x128xbf16>
    %c0_4 = arith.constant 0 : index
    %c0_5 = arith.constant 0 : index
    %5 = vector.load %arg4[%c0_4, %c0_5] : memref<128x128xbf16, #tpu.memory_space<vmem>>, vector<128x128xbf16>
    %cst = arith.constant dense<0.000000e+00> : vector<512x128xf32>
    %6 = tpu.matmul %4, %5, %cst {dimension_numbers = #tpu.dot_dimension_numbers<[1], [0], [0], [1], [0, 0, 1, 1], [], []>} : vector<512x128xbf16>, vector<128x128xbf16>, vector<512x128xf32> -> vector<512x128xf32>
    %7 = arith.addf %3, %6 : vector<512x128xf32>
    %c0_6 = arith.constant 0 : index
    %c0_7 = arith.constant 0 : index
    %8 = vector.load %arg8[%c0_6, %c0_7] : memref<512x128xf32, #tpu.memory_space<vmem>>, vector<512x128xf32>
    tpu.vector_store %arg8[%c0_6, %c0_7], %7 {strides = array<i32>} : memref<512x128xf32, #tpu.memory_space<vmem>>, vector<512x128xf32>,
    %c0_i32_8 = arith.constant 0 : i32
    %9 = arith.cmpi eq, %arg2, %c0_i32_8 : i32
    %10 = arith.extui %9 : i1 to i32
    %c0_i32_9 = arith.constant 0 : i32
    %11 = arith.cmpi ne, %10, %c0_i32_9 : i32
    scf.if %11 {
      %c0_10 = arith.constant 0 : index
      %c0_11 = arith.constant 0 : index
      %12 = vector.load %arg8[%c0_10, %c0_11] : memref<512x128xf32, #tpu.memory_space<vmem>>, vector<512x128xf32>
      %c0_12 = arith.constant 0 : index
      %c0_13 = arith.constant 0 : index
      %13 = vector.load %arg5[%c0_12, %c0_13] : memref<512x128xf32, #tpu.memory_space<vmem>>, vector<512x128xf32>
      tpu.vector_store %arg5[%c0_12, %c0_13], %12 {strides = array<i32>} : memref<512x128xf32, #tpu.memory_space<vmem>>, vector<512x128xf32>,
      %cst_14 = arith.constant dense<0.000000e+00> : vector<128xf32>
      %14 = vector.multi_reduction <add>, %12, %cst_14 [0] : vector<512x128xf32> to vector<128xf32>
      %15 = vector.shape_cast %14 : vector<128xf32> to vector<1x128xf32>
      %16 = arith.mulf %12, %12 : vector<512x128xf32>
      %cst_15 = arith.constant dense<0.000000e+00> : vector<128xf32>
      %17 = vector.multi_reduction <add>, %16, %cst_15 [0] : vector<512x128xf32> to vector<128xf32>
      %18 = vector.shape_cast %17 : vector<128xf32> to vector<1x128xf32>
      %19 = vector.shape_cast %15 : vector<1x128xf32> to vector<1x128xf32>
      %20 = vector.broadcast %19 : vector<1x128xf32> to vector<8x128xf32>
      %c0_16 = arith.constant 0 : index
      %c0_17 = arith.constant 0 : index
      %21 = vector.load %arg6[%c0_16, %c0_17] : memref<8x128xf32, #tpu.memory_space<vmem>>, vector<8x128xf32>
      tpu.vector_store %arg6[%c0_16, %c0_17], %20 {strides = array<i32>} : memref<8x128xf32, #tpu.memory_space<vmem>>, vector<8x128xf32>,
      %22 = vector.shape_cast %18 : vector<1x128xf32> to vector<1x128xf32>
      %23 = vector.broadcast %22 : vector<1x128xf32> to vector<8x128xf32>
      %c0_18 = arith.constant 0 : index
      %c0_19 = arith.constant 0 : index
      %24 = vector.load %arg7[%c0_18, %c0_19] : memref<8x128xf32, #tpu.memory_space<vmem>>, vector<8x128xf32>
      tpu.vector_store %arg7[%c0_18, %c0_19], %23 {strides = array<i32>} : memref<8x128xf32, #tpu.memory_space<vmem>>, vector<8x128xf32>,
    } else {
    }
    return
  }
  func.func @transform_0(%arg0: i32, %arg1: i32, %arg2: i32) -> (i32, i32) {
    %c0_i32 = arith.constant 0 : i32
    return %arg0, %arg2 : i32, i32
  }
  func.func @transform_1(%arg0: i32, %arg1: i32, %arg2: i32) -> (i32, i32) {
    %c0_i32 = arith.constant 0 : i32
    return %arg2, %arg1 : i32, i32
  }
  func.func @transform_2(%arg0: i32, %arg1: i32, %arg2: i32) -> (i32, i32) {
    %c0_i32 = arith.constant 0 : i32
    return %arg0, %arg1 : i32, i32
  }
  func.func @transform_3(%arg0: i32, %arg1: i32, %arg2: i32) -> (i32, i32) {
    %c0_i32 = arith.constant 0 : i32
    return %arg0, %arg1 : i32, i32
  }
  func.func @transform_4(%arg0: i32, %arg1: i32, %arg2: i32) -> (i32, i32) {
    %c0_i32 = arith.constant 0 : i32
    return %arg0, %arg1 : i32, i32
  }
}

module attributes {stable_mosaic.version = 11 : i64} {
  func.func @_bn_act_kernel(%arg0: i32, %arg1: i32, %arg2: memref<512x128xf32, #tpu.memory_space<vmem>>, %arg3: memref<1x128xf32, #tpu.memory_space<vmem>>, %arg4: memref<1x128xf32, #tpu.memory_space<vmem>>, %arg5: memref<512x128xbf16, #tpu.memory_space<vmem>>) attributes {dimension_semantics = [#tpu.dimension_semantics<parallel>, #tpu.dimension_semantics<parallel>], iteration_bounds = array<i64: 1, 1>, scalar_prefetch = 0 : i64, scratch_operands = 0 : i64, tpu.core_type = #tpu.core_type<tc>, window_params = [{transform_indices = @transform_0, window_bounds = array<i64: 512, 128>}, {transform_indices = @transform_1, window_bounds = array<i64: 1, 128>}, {transform_indices = @transform_2, window_bounds = array<i64: 1, 128>}, {transform_indices = @transform_3, window_bounds = array<i64: 512, 128>}]} {
    %c0 = arith.constant 0 : index
    %c0_0 = arith.constant 0 : index
    %0 = vector.load %arg2[%c0, %c0_0] : memref<512x128xf32, #tpu.memory_space<vmem>>, vector<512x128xf32>
    %c0_1 = arith.constant 0 : index
    %c0_2 = arith.constant 0 : index
    %1 = vector.load %arg3[%c0_1, %c0_2] : memref<1x128xf32, #tpu.memory_space<vmem>>, vector<1x128xf32>
    %2 = vector.broadcast %1 : vector<1x128xf32> to vector<512x128xf32>
    %3 = arith.mulf %0, %2 : vector<512x128xf32>
    %c0_3 = arith.constant 0 : index
    %c0_4 = arith.constant 0 : index
    %4 = vector.load %arg4[%c0_3, %c0_4] : memref<1x128xf32, #tpu.memory_space<vmem>>, vector<1x128xf32>
    %5 = vector.broadcast %4 : vector<1x128xf32> to vector<512x128xf32>
    %6 = arith.addf %3, %5 : vector<512x128xf32>
    %cst = arith.constant 0.000000e+00 : f32
    %7 = vector.broadcast %cst : f32 to vector<512x128xf32>
    %8 = arith.maximumf %6, %7 : vector<512x128xf32>
    %9 = arith.truncf %8 : vector<512x128xf32> to vector<512x128xbf16>
    %c0_5 = arith.constant 0 : index
    %c0_6 = arith.constant 0 : index
    %10 = vector.load %arg5[%c0_5, %c0_6] : memref<512x128xbf16, #tpu.memory_space<vmem>>, vector<512x128xbf16>
    tpu.vector_store %arg5[%c0_5, %c0_6], %9 {strides = array<i32>} : memref<512x128xbf16, #tpu.memory_space<vmem>>, vector<512x128xbf16>,
    return
  }
  func.func @transform_0(%arg0: i32, %arg1: i32) -> (i32, i32) {
    %c0_i32 = arith.constant 0 : i32
    return %arg0, %arg1 : i32, i32
  }
  func.func @transform_1(%arg0: i32, %arg1: i32) -> (i32, i32) {
    %c0_i32 = arith.constant 0 : i32
    %c0_i32_0 = arith.constant 0 : i32
    return %c0_i32, %arg1 : i32, i32
  }
  func.func @transform_2(%arg0: i32, %arg1: i32) -> (i32, i32) {
    %c0_i32 = arith.constant 0 : i32
    %c0_i32_0 = arith.constant 0 : i32
    return %c0_i32, %arg1 : i32, i32
  }
  func.func @transform_3(%arg0: i32, %arg1: i32) -> (i32, i32) {
    %c0_i32 = arith.constant 0 : i32
    return %arg0, %arg1 : i32, i32
  }
}

module attributes {stable_mosaic.version = 11 : i64} {
  func.func @_bn_add_relu_kernel(%arg0: i32, %arg1: i32, %arg2: memref<512x128xf32, #tpu.memory_space<vmem>>, %arg3: memref<1x128xf32, #tpu.memory_space<vmem>>, %arg4: memref<1x128xf32, #tpu.memory_space<vmem>>, %arg5: memref<512x128xf32, #tpu.memory_space<vmem>>, %arg6: memref<1x128xf32, #tpu.memory_space<vmem>>, %arg7: memref<1x128xf32, #tpu.memory_space<vmem>>, %arg8: memref<512x128xf32, #tpu.memory_space<vmem>>) attributes {dimension_semantics = [#tpu.dimension_semantics<parallel>, #tpu.dimension_semantics<parallel>], iteration_bounds = array<i64: 1, 1>, scalar_prefetch = 0 : i64, scratch_operands = 0 : i64, tpu.core_type = #tpu.core_type<tc>, window_params = [{transform_indices = @transform_0, window_bounds = array<i64: 512, 128>}, {transform_indices = @transform_1, window_bounds = array<i64: 1, 128>}, {transform_indices = @transform_2, window_bounds = array<i64: 1, 128>}, {transform_indices = @transform_3, window_bounds = array<i64: 512, 128>}, {transform_indices = @transform_4, window_bounds = array<i64: 1, 128>}, {transform_indices = @transform_5, window_bounds = array<i64: 1, 128>}, {transform_indices = @transform_6, window_bounds = array<i64: 512, 128>}]} {
    %c0 = arith.constant 0 : index
    %c0_0 = arith.constant 0 : index
    %0 = vector.load %arg2[%c0, %c0_0] : memref<512x128xf32, #tpu.memory_space<vmem>>, vector<512x128xf32>
    %c0_1 = arith.constant 0 : index
    %c0_2 = arith.constant 0 : index
    %1 = vector.load %arg3[%c0_1, %c0_2] : memref<1x128xf32, #tpu.memory_space<vmem>>, vector<1x128xf32>
    %2 = vector.broadcast %1 : vector<1x128xf32> to vector<512x128xf32>
    %3 = arith.mulf %0, %2 : vector<512x128xf32>
    %c0_3 = arith.constant 0 : index
    %c0_4 = arith.constant 0 : index
    %4 = vector.load %arg4[%c0_3, %c0_4] : memref<1x128xf32, #tpu.memory_space<vmem>>, vector<1x128xf32>
    %5 = vector.broadcast %4 : vector<1x128xf32> to vector<512x128xf32>
    %6 = arith.addf %3, %5 : vector<512x128xf32>
    %c0_5 = arith.constant 0 : index
    %c0_6 = arith.constant 0 : index
    %7 = vector.load %arg5[%c0_5, %c0_6] : memref<512x128xf32, #tpu.memory_space<vmem>>, vector<512x128xf32>
    %c0_7 = arith.constant 0 : index
    %c0_8 = arith.constant 0 : index
    %8 = vector.load %arg6[%c0_7, %c0_8] : memref<1x128xf32, #tpu.memory_space<vmem>>, vector<1x128xf32>
    %9 = vector.broadcast %8 : vector<1x128xf32> to vector<512x128xf32>
    %10 = arith.mulf %7, %9 : vector<512x128xf32>
    %c0_9 = arith.constant 0 : index
    %c0_10 = arith.constant 0 : index
    %11 = vector.load %arg7[%c0_9, %c0_10] : memref<1x128xf32, #tpu.memory_space<vmem>>, vector<1x128xf32>
    %12 = vector.broadcast %11 : vector<1x128xf32> to vector<512x128xf32>
    %13 = arith.addf %10, %12 : vector<512x128xf32>
    %14 = arith.addf %6, %13 : vector<512x128xf32>
    %cst = arith.constant 0.000000e+00 : f32
    %15 = vector.broadcast %cst : f32 to vector<512x128xf32>
    %16 = arith.maximumf %14, %15 : vector<512x128xf32>
    %c0_11 = arith.constant 0 : index
    %c0_12 = arith.constant 0 : index
    %17 = vector.load %arg8[%c0_11, %c0_12] : memref<512x128xf32, #tpu.memory_space<vmem>>, vector<512x128xf32>
    tpu.vector_store %arg8[%c0_11, %c0_12], %16 {strides = array<i32>} : memref<512x128xf32, #tpu.memory_space<vmem>>, vector<512x128xf32>,
    return
  }
  func.func @transform_0(%arg0: i32, %arg1: i32) -> (i32, i32) {
    %c0_i32 = arith.constant 0 : i32
    return %arg0, %arg1 : i32, i32
  }
  func.func @transform_1(%arg0: i32, %arg1: i32) -> (i32, i32) {
    %c0_i32 = arith.constant 0 : i32
    %c0_i32_0 = arith.constant 0 : i32
    return %c0_i32, %arg1 : i32, i32
  }
  func.func @transform_2(%arg0: i32, %arg1: i32) -> (i32, i32) {
    %c0_i32 = arith.constant 0 : i32
    %c0_i32_0 = arith.constant 0 : i32
    return %c0_i32, %arg1 : i32, i32
  }
  func.func @transform_3(%arg0: i32, %arg1: i32) -> (i32, i32) {
    %c0_i32 = arith.constant 0 : i32
    return %arg0, %arg1 : i32, i32
  }
  func.func @transform_4(%arg0: i32, %arg1: i32) -> (i32, i32) {
    %c0_i32 = arith.constant 0 : i32
    %c0_i32_0 = arith.constant 0 : i32
    return %c0_i32, %arg1 : i32, i32
  }
  func.func @transform_5(%arg0: i32, %arg1: i32) -> (i32, i32) {
    %c0_i32 = arith.constant 0 : i32
    %c0_i32_0 = arith.constant 0 : i32
    return %c0_i32, %arg1 : i32, i32
  }
  func.func @transform_6(%arg0: i32, %arg1: i32) -> (i32, i32) {
    %c0_i32 = arith.constant 0 : i32
    return %arg0, %arg1 : i32, i32
  }
}

</mosaic_0001>

<llo_original>
// kernel: basic_block_std.5
$region0: #{basic_block_std.5}
  #allocation0 [shape = 'u32[]', space=smem, size = 0x4, offset = 0x4, fixed_abs, tag = 'smem constant byte address 0x4 - core index']
  #allocation1 [shape = 'u32[144,128]{1,0:T(1,128)}', space=vmem, size = 0x12000, scoped, tag = 'internal scratch']
  %s0 = inlined_call_operand.hbm [shape: f32[512,128], index: 0, kind: input, shape index: {}]
  %s1 = inlined_call_operand.hbm [shape: f32[1,128], index: 1, kind: input, shape index: {}]
  %s2 = inlined_call_operand.hbm [shape: f32[1,128], index: 2, kind: input, shape index: {}]
  %s3 = inlined_call_operand.hbm [shape: bf16[512,128], index: 3, kind: output, shape index: {}]
  %s4 = sld [smem:[#allocation0]]
  $region34: #{basic_block_std.5} parent=0
    _
  %s6 = ssub.s32 1, %s4
  %s7 = scalar_select 0, %s6, %s4
  $region1: #{basic_block_std.5} parent=0
    #allocation2 [shape = 'u8[262144]{0}', space=vmem, size = 0x40000, scoped, tag = 'input window, operand 0, single buffered']
    #allocation3 [shape = 's32[1]{0}', space=sflag, size = 0x4, scoped, tag = 'scoped memory for basic_block_std.5']
    #allocation4 [shape = 's32[1]{0}', space=sflag, size = 0x4, scoped, tag = 'scoped memory for basic_block_std.5']
    #allocation5 [shape = 'u8[512]{0}', space=vmem, size = 0x400, scoped, tag = 'input window, operand 1, single buffered']
    #allocation6 [shape = 's32[1]{0}', space=sflag, size = 0x4, scoped, tag = 'scoped memory for basic_block_std.5']
    #allocation7 [shape = 'u8[512]{0}', space=vmem, size = 0x400, scoped, tag = 'input window, operand 2, single buffered']
    #allocation8 [shape = 'u8[131072]{0}', space=vmem, size = 0x20000, scoped, tag = 'output window, operand 0, single buffered']
    %8 = vsyncpa [#allocation3], 0
    %9 = vsyncpa [#allocation6], 0
    %10 = vsyncpa [#allocation4], 0
    // Predicated region
    $region2: #{basic_block_std.5} parent=1 // pred_check
      _
    $region3: #{basic_block_std.5} parent=1 // pred_check_branch
      %12 = sbr.rel (0) target = $region5
    $region4: #{basic_block_std.5} parent=1 // pred_region
      %s14 = ssub.s32 8192, 8192
      %15 = vsyncadd [#allocation3], %s14
      %s16 = sshll.u32 [#allocation2], 4
      %s17 = int_to_ptr.vmem [resolvable:$true] %s16
      %22 = dma.hbm_to_vmem [thread:$0]  %s0, 8192, %s17, [#allocation3], 128, 128, 8
    $region5: #{basic_block_std.5} parent=1 // pred_fallthru
      _
    // Predicated region
    $region6: #{basic_block_std.5} parent=1 // pred_check
      _
    $region7: #{basic_block_std.5} parent=1 // pred_check_branch
      %24 = sbr.rel (0) target = $region9
    $region8: #{basic_block_std.5} parent=1 // pred_region
      %s26 = ssub.s32 16, 16
      %27 = vsyncadd [#allocation6], %s26
      %s29 = sshll.u32 [#allocation5], 4
      %s30 = int_to_ptr.vmem [resolvable:$true] %s29
      %32 = dma.hbm_to_vmem [thread:$0]  %s1, 16, %s30, [#allocation6]
    $region9: #{basic_block_std.5} parent=1 // pred_fallthru
      _
    // Predicated region
    $region10: #{basic_block_std.5} parent=1 // pred_check
      _
    $region11: #{basic_block_std.5} parent=1 // pred_check_branch
      %34 = sbr.rel (0) target = $region13
    $region12: #{basic_block_std.5} parent=1 // pred_region
      %s36 = ssub.s32 16, 16
      %37 = vsyncadd [#allocation6], %s36
      %s39 = sshll.u32 [#allocation7], 4
      %s40 = int_to_ptr.vmem [resolvable:$true] %s39
      %42 = dma.hbm_to_vmem [thread:$0]  %s2, 16, %s40, [#allocation6]
    $region13: #{basic_block_std.5} parent=1 // pred_fallthru
      _
    // Predicated region
    $region14: #{basic_block_std.5} parent=1 // pred_check
      _
    $region15: #{basic_block_std.5} parent=1 // pred_check_branch
      %44 = sbr.rel (0) target = $region17
    $region16: #{basic_block_std.5} parent=1 // pred_region
      %45 = dma.done [#allocation3], 8192
    $region17: #{basic_block_std.5} parent=1 // pred_fallthru
      _
    // Predicated region
    $region18: #{basic_block_std.5} parent=1 // pred_check
      _
    $region19: #{basic_block_std.5} parent=1 // pred_check_branch
      %47 = sbr.rel (0) target = $region21
    $region20: #{basic_block_std.5} parent=1 // pred_region
      %48 = dma.done [#allocation6], 16
    $region21: #{basic_block_std.5} parent=1 // pred_fallthru
      _
    // Predicated region
    $region22: #{basic_block_std.5} parent=1 // pred_check
      _
    $region23: #{basic_block_std.5} parent=1 // pred_check_branch
      %50 = sbr.rel (0) target = $region25
    $region24: #{basic_block_std.5} parent=1 // pred_region
      %51 = dma.done [#allocation6], 16
    $region25: #{basic_block_std.5} parent=1 // pred_fallthru
      _
    %v52 = vld [vmem:[#allocation2] sm:$0xff]
    %v53 = vld [vmem:[#allocation2 + $0x8] sm:$0xff]
    %v54 = vld [vmem:[#allocation2 + $0x10] sm:$0xff]
    %v55 = vld [vmem:[#allocation2 + $0x18] sm:$0xff]
    %v56 = vld [vmem:[#allocation2 + $0x20] sm:$0xff]
    %v57 = vld [vmem:[#allocation2 + $0x28] sm:$0xff]
    %v58 = vld [vmem:[#allocation2 + $0x30] sm:$0xff]
    %v59 = vld [vmem:[#allocation2 + $0x38] sm:$0xff]
    %v60 = vld [vmem:[#allocation2 + $0x40] sm:$0xff]
    %v61 = vld [vmem:[#allocation2 + $0x48] sm:$0xff]
    %v62 = vld [vmem:[#allocation2 + $0x50] sm:$0xff]
    %v63 = vld [vmem:[#allocation2 + $0x58] sm:$0xff]
    %v64 = vld [vmem:[#allocation2 + $0x60] sm:$0xff]
    %v65 = vld [vmem:[#allocation2 + $0x68] sm:$0xff]
    %v66 = vld [vmem:[#allocation2 + $0x70] sm:$0xff]
    %v67 = vld [vmem:[#allocation2 + $0x78] sm:$0xff]
    %v68 = vld [vmem:[#allocation2 + $0x80] sm:$0xff]
    %v69 = vld [vmem:[#allocation2 + $0x88] sm:$0xff]
    %v70 = vld [vmem:[#allocation2 + $0x90] sm:$0xff]
    %v71 = vld [vmem:[#allocation2 + $0x98] sm:$0xff]
    %v72 = vld [vmem:[#allocation2 + $0xa0] sm:$0xff]
    %v73 = vld [vmem:[#allocation2 + $0xa8] sm:$0xff]
    %v74 = vld [vmem:[#allocation2 + $0xb0] sm:$0xff]
    %v75 = vld [vmem:[#allocation2 + $0xb8] sm:$0xff]
    %v76 = vld [vmem:[#allocation2 + $0xc0] sm:$0xff]
    %v77 = vld [vmem:[#allocation2 + $0xc8] sm:$0xff]
    %v78 = vld [vmem:[#allocation2 + $0xd0] sm:$0xff]
    %v79 = vld [vmem:[#allocation2 + $0xd8] sm:$0xff]
    %v80 = vld [vmem:[#allocation2 + $0xe0] sm:$0xff]
    %v81 = vld [vmem:[#allocation2 + $0xe8] sm:$0xff]
    %v82 = vld [vmem:[#allocation2 + $0xf0] sm:$0xff]
    %v83 = vld [vmem:[#allocation2 + $0xf8] sm:$0xff]
    %v84 = vld [vmem:[#allocation2 + $0x100] sm:$0xff]
    %v85 = vld [vmem:[#allocation2 + $0x108] sm:$0xff]
    %v86 = vld [vmem:[#allocation2 + $0x110] sm:$0xff]
    %v87 = vld [vmem:[#allocation2 + $0x118] sm:$0xff]
    %v88 = vld [vmem:[#allocation2 + $0x120] sm:$0xff]
    %v89 = vld [vmem:[#allocation2 + $0x128] sm:$0xff]
    %v90 = vld [vmem:[#allocation2 + $0x130] sm:$0xff]
    %v91 = vld [vmem:[#allocation2 + $0x138] sm:$0xff]
    %v92 = vld [vmem:[#allocation2 + $0x140] sm:$0xff]
    %v93 = vld [vmem:[#allocation2 + $0x148] sm:$0xff]
    %v94 = vld [vmem:[#allocation2 + $0x150] sm:$0xff]
    %v95 = vld [vmem:[#allocation2 + $0x158] sm:$0xff]
    %v96 = vld [vmem:[#allocation2 + $0x160] sm:$0xff]
    %v97 = vld [vmem:[#allocation2 + $0x168] sm:$0xff]
    %v98 = vld [vmem:[#allocation2 + $0x170] sm:$0xff]
    %v99 = vld [vmem:[#allocation2 + $0x178] sm:$0xff]
    %v100 = vld [vmem:[#allocation2 + $0x180] sm:$0xff]
    %v101 = vld [vmem:[#allocation2 + $0x188] sm:$0xff]
    %v102 = vld [vmem:[#allocation2 + $0x190] sm:$0xff]
    %v103 = vld [vmem:[#allocation2 + $0x198] sm:$0xff]
    %v104 = vld [vmem:[#allocation2 + $0x1a0] sm:$0xff]
    %v105 = vld [vmem:[#allocation2 + $0x1a8] sm:$0xff]
    %v106 = vld [vmem:[#allocation2 + $0x1b0] sm:$0xff]
    %v107 = vld [vmem:[#allocation2 + $0x1b8] sm:$0xff]
    %v108 = vld [vmem:[#allocation2 + $0x1c0] sm:$0xff]
    %v109 = vld [vmem:[#allocation2 + $0x1c8] sm:$0xff]
    %v110 = vld [vmem:[#allocation2 + $0x1d0] sm:$0xff]
    %v111 = vld [vmem:[#allocation2 + $0x1d8] sm:$0xff]
    %v112 = vld [vmem:[#allocation2 + $0x1e0] sm:$0xff]
    %v113 = vld [vmem:[#allocation2 + $0x1e8] sm:$0xff]
    %v114 = vld [vmem:[#allocation2 + $0x1f0] sm:$0xff]
    %v115 = vld [vmem:[#allocation2 + $0x1f8] sm:$0xff]
    %v116 = vld [vmem:[#allocation5] sm:$0x1]
    %v118 = vlaneseq
    %v119 = vshrl.u32 %v118, 7
    %v120 = vsub.s32 0, %v119
    %v121 = vrot.slane %v116, %v120
    %v123 = vmul.f32 %v52, %v121
    %v124 = vmul.f32 %v53, %v121
    %v125 = vmul.f32 %v54, %v121
    %v126 = vmul.f32 %v55, %v121
    %v127 = vmul.f32 %v56, %v121
    %v128 = vmul.f32 %v57, %v121
    %v129 = vmul.f32 %v58, %v121
    %v130 = vmul.f32 %v59, %v121
    %v131 = vmul.f32 %v60, %v121
    %v132 = vmul.f32 %v61, %v121
    %v133 = vmul.f32 %v62, %v121
    %v134 = vmul.f32 %v63, %v121
    %v135 = vmul.f32 %v64, %v121
    %v136 = vmul.f32 %v65, %v121
    %v137 = vmul.f32 %v66, %v121
    %v138 = vmul.f32 %v67, %v121
    %v139 = vmul.f32 %v68, %v121
    %v140 = vmul.f32 %v69, %v121
    %v141 = vmul.f32 %v70, %v121
    %v142 = vmul.f32 %v71, %v121
    %v143 = vmul.f32 %v72, %v121
    %v144 = vmul.f32 %v73, %v121
    %v145 = vmul.f32 %v74, %v121
    %v146 = vmul.f32 %v75, %v121
    %v147 = vmul.f32 %v76, %v121
    %v148 = vmul.f32 %v77, %v121
    %v149 = vmul.f32 %v78, %v121
    %v150 = vmul.f32 %v79, %v121
    %v151 = vmul.f32 %v80, %v121
    %v152 = vmul.f32 %v81, %v121
    %v153 = vmul.f32 %v82, %v121
    %v154 = vmul.f32 %v83, %v121
    %v155 = vmul.f32 %v84, %v121
    %v156 = vmul.f32 %v85, %v121
    %v157 = vmul.f32 %v86, %v121
    %v158 = vmul.f32 %v87, %v121
    %v159 = vmul.f32 %v88, %v121
    %v160 = vmul.f32 %v89, %v121
    %v161 = vmul.f32 %v90, %v121
    %v162 = vmul.f32 %v91, %v121
    %v163 = vmul.f32 %v92, %v121
    %v164 = vmul.f32 %v93, %v121
    %v165 = vmul.f32 %v94, %v121
    %v166 = vmul.f32 %v95, %v121
    %v167 = vmul.f32 %v96, %v121
    %v168 = vmul.f32 %v97, %v121
    %v169 = vmul.f32 %v98, %v121
    %v170 = vmul.f32 %v99, %v121
    %v171 = vmul.f32 %v100, %v121
    %v172 = vmul.f32 %v101, %v121
    %v173 = vmul.f32 %v102, %v121
    %v174 = vmul.f32 %v103, %v121
    %v175 = vmul.f32 %v104, %v121
    %v176 = vmul.f32 %v105, %v121
    %v177 = vmul.f32 %v106, %v121
    %v178 = vmul.f32 %v107, %v121
    %v179 = vmul.f32 %v108, %v121
    %v180 = vmul.f32 %v109, %v121
    %v181 = vmul.f32 %v110, %v121
    %v182 = vmul.f32 %v111, %v121
    %v183 = vmul.f32 %v112, %v121
    %v184 = vmul.f32 %v113, %v121
    %v185 = vmul.f32 %v114, %v121
    %v186 = vmul.f32 %v115, %v121
    %v187 = vld [vmem:[#allocation7] sm:$0x1]
    %v189 = vlaneseq
    %v190 = vshrl.u32 %v189, 7
    %v191 = vsub.s32 0, %v190
    %v192 = vrot.slane %v187, %v191
    %v194 = vadd.f32 %v123, %v192
    %v195 = vadd.f32 %v124, %v192
    %v196 = vadd.f32 %v125, %v192
    %v197 = vadd.f32 %v126, %v192
    %v198 = vadd.f32 %v127, %v192
    %v199 = vadd.f32 %v128, %v192
    %v200 = vadd.f32 %v129, %v192
    %v201 = vadd.f32 %v130, %v192
    %v202 = vadd.f32 %v131, %v192
    %v203 = vadd.f32 %v132, %v192
    %v204 = vadd.f32 %v133, %v192
    %v205 = vadd.f32 %v134, %v192
    %v206 = vadd.f32 %v135, %v192
    %v207 = vadd.f32 %v136, %v192
    %v208 = vadd.f32 %v137, %v192
    %v209 = vadd.f32 %v138, %v192
    %v210 = vadd.f32 %v139, %v192
    %v211 = vadd.f32 %v140, %v192
    %v212 = vadd.f32 %v141, %v192
    %v213 = vadd.f32 %v142, %v192
    %v214 = vadd.f32 %v143, %v192
    %v215 = vadd.f32 %v144, %v192
    %v216 = vadd.f32 %v145, %v192
    %v217 = vadd.f32 %v146, %v192
    %v218 = vadd.f32 %v147, %v192
    %v219 = vadd.f32 %v148, %v192
    %v220 = vadd.f32 %v149, %v192
    %v221 = vadd.f32 %v150, %v192
    %v222 = vadd.f32 %v151, %v192
    %v223 = vadd.f32 %v152, %v192
    %v224 = vadd.f32 %v153, %v192
    %v225 = vadd.f32 %v154, %v192
    %v226 = vadd.f32 %v155, %v192
    %v227 = vadd.f32 %v156, %v192
    %v228 = vadd.f32 %v157, %v192
    %v229 = vadd.f32 %v158, %v192
    %v230 = vadd.f32 %v159, %v192
    %v231 = vadd.f32 %v160, %v192
    %v232 = vadd.f32 %v161, %v192
    %v233 = vadd.f32 %v162, %v192
    %v234 = vadd.f32 %v163, %v192
    %v235 = vadd.f32 %v164, %v192
    %v236 = vadd.f32 %v165, %v192
    %v237 = vadd.f32 %v166, %v192
    %v238 = vadd.f32 %v167, %v192
    %v239 = vadd.f32 %v168, %v192
    %v240 = vadd.f32 %v169, %v192
    %v241 = vadd.f32 %v170, %v192
    %v242 = vadd.f32 %v171, %v192
    %v243 = vadd.f32 %v172, %v192
    %v244 = vadd.f32 %v173, %v192
    %v245 = vadd.f32 %v174, %v192
    %v246 = vadd.f32 %v175, %v192
    %v247 = vadd.f32 %v176, %v192
    %v248 = vadd.f32 %v177, %v192
    %v249 = vadd.f32 %v178, %v192
    %v250 = vadd.f32 %v179, %v192
    %v251 = vadd.f32 %v180, %v192
    %v252 = vadd.f32 %v181, %v192
    %v253 = vadd.f32 %v182, %v192
    %v254 = vadd.f32 %v183, %v192
    %v255 = vadd.f32 %v184, %v192
    %v256 = vadd.f32 %v185, %v192
    %v257 = vadd.f32 %v186, %v192
    %v258 = vmax.f32 %v194, 0.0
    %v259 = vmax.f32 %v195, 0.0
    %v260 = vmax.f32 %v196, 0.0
    %v261 = vmax.f32 %v197, 0.0
    %v262 = vmax.f32 %v198, 0.0
    %v263 = vmax.f32 %v199, 0.0
    %v264 = vmax.f32 %v200, 0.0
    %v265 = vmax.f32 %v201, 0.0
    %v266 = vmax.f32 %v202, 0.0
    %v267 = vmax.f32 %v203, 0.0
    %v268 = vmax.f32 %v204, 0.0
    %v269 = vmax.f32 %v205, 0.0
    %v270 = vmax.f32 %v206, 0.0
    %v271 = vmax.f32 %v207, 0.0
    %v272 = vmax.f32 %v208, 0.0
    %v273 = vmax.f32 %v209, 0.0
    %v274 = vmax.f32 %v210, 0.0
    %v275 = vmax.f32 %v211, 0.0
    %v276 = vmax.f32 %v212, 0.0
    %v277 = vmax.f32 %v213, 0.0
    %v278 = vmax.f32 %v214, 0.0
    %v279 = vmax.f32 %v215, 0.0
    %v280 = vmax.f32 %v216, 0.0
    %v281 = vmax.f32 %v217, 0.0
    %v282 = vmax.f32 %v218, 0.0
    %v283 = vmax.f32 %v219, 0.0
    %v284 = vmax.f32 %v220, 0.0
    %v285 = vmax.f32 %v221, 0.0
    %v286 = vmax.f32 %v222, 0.0
    %v287 = vmax.f32 %v223, 0.0
    %v288 = vmax.f32 %v224, 0.0
    %v289 = vmax.f32 %v225, 0.0
    %v290 = vmax.f32 %v226, 0.0
    %v291 = vmax.f32 %v227, 0.0
    %v292 = vmax.f32 %v228, 0.0
    %v293 = vmax.f32 %v229, 0.0
    %v294 = vmax.f32 %v230, 0.0
    %v295 = vmax.f32 %v231, 0.0
    %v296 = vmax.f32 %v232, 0.0
    %v297 = vmax.f32 %v233, 0.0
    %v298 = vmax.f32 %v234, 0.0
    %v299 = vmax.f32 %v235, 0.0
    %v300 = vmax.f32 %v236, 0.0
    %v301 = vmax.f32 %v237, 0.0
    %v302 = vmax.f32 %v238, 0.0
    %v303 = vmax.f32 %v239, 0.0
    %v304 = vmax.f32 %v240, 0.0
    %v305 = vmax.f32 %v241, 0.0
    %v306 = vmax.f32 %v242, 0.0
    %v307 = vmax.f32 %v243, 0.0
    %v308 = vmax.f32 %v244, 0.0
    %v309 = vmax.f32 %v245, 0.0
    %v310 = vmax.f32 %v246, 0.0
    %v311 = vmax.f32 %v247, 0.0
    %v312 = vmax.f32 %v248, 0.0
    %v313 = vmax.f32 %v249, 0.0
    %v314 = vmax.f32 %v250, 0.0
    %v315 = vmax.f32 %v251, 0.0
    %v316 = vmax.f32 %v252, 0.0
    %v317 = vmax.f32 %v253, 0.0
    %v318 = vmax.f32 %v254, 0.0
    %v319 = vmax.f32 %v255, 0.0
    %v320 = vmax.f32 %v256, 0.0
    %v321 = vmax.f32 %v257, 0.0
    %v322 = vpack.c.bf16 %v259, %v258
    %v323 = vpack.c.bf16 %v261, %v260
    %v324 = vpack.c.bf16 %v263, %v262
    %v325 = vpack.c.bf16 %v265, %v264
    %v326 = vpack.c.bf16 %v267, %v266
    %v327 = vpack.c.bf16 %v269, %v268
    %v328 = vpack.c.bf16 %v271, %v270
    %v329 = vpack.c.bf16 %v273, %v272
    %v330 = vpack.c.bf16 %v275, %v274
    %v331 = vpack.c.bf16 %v277, %v276
    %v332 = vpack.c.bf16 %v279, %v278
    %v333 = vpack.c.bf16 %v281, %v280
    %v334 = vpack.c.bf16 %v283, %v282
    %v335 = vpack.c.bf16 %v285, %v284
    %v336 = vpack.c.bf16 %v287, %v286
    %v337 = vpack.c.bf16 %v289, %v288
    %v338 = vpack.c.bf16 %v291, %v290
    %v339 = vpack.c.bf16 %v293, %v292
    %v340 = vpack.c.bf16 %v295, %v294
    %v341 = vpack.c.bf16 %v297, %v296
    %v342 = vpack.c.bf16 %v299, %v298
    %v343 = vpack.c.bf16 %v301, %v300
    %v344 = vpack.c.bf16 %v303, %v302
    %v345 = vpack.c.bf16 %v305, %v304
    %v346 = vpack.c.bf16 %v307, %v306
    %v347 = vpack.c.bf16 %v309, %v308
    %v348 = vpack.c.bf16 %v311, %v310
    %v349 = vpack.c.bf16 %v313, %v312
    %v350 = vpack.c.bf16 %v315, %v314
    %v351 = vpack.c.bf16 %v317, %v316
    %v352 = vpack.c.bf16 %v319, %v318
    %v353 = vpack.c.bf16 %v321, %v320
    %v386 = vunpack.c.l.b16 %v322
    %v387 = vunpack.c.h.b16 %v322
    %v388 = vunpack.c.l.b16 %v323
    %v389 = vunpack.c.h.b16 %v323
    %v390 = vunpack.c.l.b16 %v324
    %v391 = vunpack.c.h.b16 %v324
    %v392 = vunpack.c.l.b16 %v325
    %v393 = vunpack.c.h.b16 %v325
    %v394 = vunpack.c.l.b16 %v326
    %v395 = vunpack.c.h.b16 %v326
    %v396 = vunpack.c.l.b16 %v327
    %v397 = vunpack.c.h.b16 %v327
    %v398 = vunpack.c.l.b16 %v328
    %v399 = vunpack.c.h.b16 %v328
    %v400 = vunpack.c.l.b16 %v329
    %v401 = vunpack.c.h.b16 %v329
    %v402 = vunpack.c.l.b16 %v330
    %v403 = vunpack.c.h.b16 %v330
    %v404 = vunpack.c.l.b16 %v331
    %v405 = vunpack.c.h.b16 %v331
    %v406 = vunpack.c.l.b16 %v332
    %v407 = vunpack.c.h.b16 %v332
    %v408 = vunpack.c.l.b16 %v333
    %v409 = vunpack.c.h.b16 %v333
    %v410 = vunpack.c.l.b16 %v334
    %v411 = vunpack.c.h.b16 %v334
    %v412 = vunpack.c.l.b16 %v335
    %v413 = vunpack.c.h.b16 %v335
    %v414 = vunpack.c.l.b16 %v336
    %v415 = vunpack.c.h.b16 %v336
    %v416 = vunpack.c.l.b16 %v337
    %v417 = vunpack.c.h.b16 %v337
    %v418 = vunpack.c.l.b16 %v338
    %v419 = vunpack.c.h.b16 %v338
    %v420 = vunpack.c.l.b16 %v339
    %v421 = vunpack.c.h.b16 %v339
    %v422 = vunpack.c.l.b16 %v340
    %v423 = vunpack.c.h.b16 %v340
    %v424 = vunpack.c.l.b16 %v341
    %v425 = vunpack.c.h.b16 %v341
    %v426 = vunpack.c.l.b16 %v342
    %v427 = vunpack.c.h.b16 %v342
    %v428 = vunpack.c.l.b16 %v343
    %v429 = vunpack.c.h.b16 %v343
    %v430 = vunpack.c.l.b16 %v344
    %v431 = vunpack.c.h.b16 %v344
    %v432 = vunpack.c.l.b16 %v345
    %v433 = vunpack.c.h.b16 %v345
    %v434 = vunpack.c.l.b16 %v346
    %v435 = vunpack.c.h.b16 %v346
    %v436 = vunpack.c.l.b16 %v347
    %v437 = vunpack.c.h.b16 %v347
    %v438 = vunpack.c.l.b16 %v348
    %v439 = vunpack.c.h.b16 %v348
    %v440 = vunpack.c.l.b16 %v349
    %v441 = vunpack.c.h.b16 %v349
    %v442 = vunpack.c.l.b16 %v350
    %v443 = vunpack.c.h.b16 %v350
    %v444 = vunpack.c.l.b16 %v351
    %v445 = vunpack.c.h.b16 %v351
    %v446 = vunpack.c.l.b16 %v352
    %v447 = vunpack.c.h.b16 %v352
    %v448 = vunpack.c.l.b16 %v353
    %v449 = vunpack.c.h.b16 %v353
    %v450 = vpack.c.b16 %v386, %v386
    %v451 = vpack.c.b16 %v387, %v387
    %v452 = vpack.c.b16 %v388, %v388
    %v453 = vpack.c.b16 %v389, %v389
    %v454 = vpack.c.b16 %v390, %v390
    %v455 = vpack.c.b16 %v391, %v391
    %v456 = vpack.c.b16 %v392, %v392
    %v457 = vpack.c.b16 %v393, %v393
    %v458 = vpack.c.b16 %v394, %v394
    %v459 = vpack.c.b16 %v395, %v395
    %v460 = vpack.c.b16 %v396, %v396
    %v461 = vpack.c.b16 %v397, %v397
    %v462 = vpack.c.b16 %v398, %v398
    %v463 = vpack.c.b16 %v399, %v399
    %v464 = vpack.c.b16 %v400, %v400
    %v465 = vpack.c.b16 %v401, %v401
    %v466 = vpack.c.b16 %v402, %v402
    %v467 = vpack.c.b16 %v403, %v403
    %v468 = vpack.c.b16 %v404, %v404
    %v469 = vpack.c.b16 %v405, %v405
    %v470 = vpack.c.b16 %v406, %v406
    %v471 = vpack.c.b16 %v407, %v407
    %v472 = vpack.c.b16 %v408, %v408
    %v473 = vpack.c.b16 %v409, %v409
    %v474 = vpack.c.b16 %v410, %v410
    %v475 = vpack.c.b16 %v411, %v411
    %v476 = vpack.c.b16 %v412, %v412
    %v477 = vpack.c.b16 %v413, %v413
    %v478 = vpack.c.b16 %v414, %v414
    %v479 = vpack.c.b16 %v415, %v415
    %v480 = vpack.c.b16 %v416, %v416
    %v481 = vpack.c.b16 %v417, %v417
    %v482 = vpack.c.b16 %v418, %v418
    %v483 = vpack.c.b16 %v419, %v419
    %v484 = vpack.c.b16 %v420, %v420
    %v485 = vpack.c.b16 %v421, %v421
    %v486 = vpack.c.b16 %v422, %v422
    %v487 = vpack.c.b16 %v423, %v423
    %v488 = vpack.c.b16 %v424, %v424
    %v489 = vpack.c.b16 %v425, %v425
    %v490 = vpack.c.b16 %v426, %v426
    %v491 = vpack.c.b16 %v427, %v427
    %v492 = vpack.c.b16 %v428, %v428
    %v493 = vpack.c.b16 %v429, %v429
    %v494 = vpack.c.b16 %v430, %v430
    %v495 = vpack.c.b16 %v431, %v431
    %v496 = vpack.c.b16 %v432, %v432
    %v497 = vpack.c.b16 %v433, %v433
    %v498 = vpack.c.b16 %v434, %v434
    %v499 = vpack.c.b16 %v435, %v435
    %v500 = vpack.c.b16 %v436, %v436
    %v501 = vpack.c.b16 %v437, %v437
    %v502 = vpack.c.b16 %v438, %v438
    %v503 = vpack.c.b16 %v439, %v439
    %v504 = vpack.c.b16 %v440, %v440
    %v505 = vpack.c.b16 %v441, %v441
    %v506 = vpack.c.b16 %v442, %v442
    %v507 = vpack.c.b16 %v443, %v443
    %v508 = vpack.c.b16 %v444, %v444
    %v509 = vpack.c.b16 %v445, %v445
    %v510 = vpack.c.b16 %v446, %v446
    %v511 = vpack.c.b16 %v447, %v447
    %v512 = vpack.c.b16 %v448, %v448
    %v513 = vpack.c.b16 %v449, %v449
    %578 = vst [vmem:[#allocation8] sm:$0xf] %v450
    %579 = vst [vmem:[#allocation8 + $0x4] sm:$0xf] %v451
    %580 = vst [vmem:[#allocation8 + $0x8] sm:$0xf] %v452
    %581 = vst [vmem:[#allocation8 + $0xc] sm:$0xf] %v453
    %582 = vst [vmem:[#allocation8 + $0x10] sm:$0xf] %v454
    %583 = vst [vmem:[#allocation8 + $0x14] sm:$0xf] %v455
    %584 = vst [vmem:[#allocation8 + $0x18] sm:$0xf] %v456
    %585 = vst [vmem:[#allocation8 + $0x1c] sm:$0xf] %v457
    %586 = vst [vmem:[#allocation8 + $0x20] sm:$0xf] %v458
    %587 = vst [vmem:[#allocation8 + $0x24] sm:$0xf] %v459
    %588 = vst [vmem:[#allocation8 + $0x28] sm:$0xf] %v460
    %589 = vst [vmem:[#allocation8 + $0x2c] sm:$0xf] %v461
    %590 = vst [vmem:[#allocation8 + $0x30] sm:$0xf] %v462
    %591 = vst [vmem:[#allocation8 + $0x34] sm:$0xf] %v463
    %592 = vst [vmem:[#allocation8 + $0x38] sm:$0xf] %v464
    %593 = vst [vmem:[#allocation8 + $0x3c] sm:$0xf] %v465
    %594 = vst [vmem:[#allocation8 + $0x40] sm:$0xf] %v466
    %595 = vst [vmem:[#allocation8 + $0x44] sm:$0xf] %v467
    %596 = vst [vmem:[#allocation8 + $0x48] sm:$0xf] %v468
    %597 = vst [vmem:[#allocation8 + $0x4c] sm:$0xf] %v469
    %598 = vst [vmem:[#allocation8 + $0x50] sm:$0xf] %v470
    %599 = vst [vmem:[#allocation8 + $0x54] sm:$0xf] %v471
    %600 = vst [vmem:[#allocation8 + $0x58] sm:$0xf] %v472
    %601 = vst [vmem:[#allocation8 + $0x5c] sm:$0xf] %v473
    %602 = vst [vmem:[#allocation8 + $0x60] sm:$0xf] %v474
    %603 = vst [vmem:[#allocation8 + $0x64] sm:$0xf] %v475
    %604 = vst [vmem:[#allocation8 + $0x68] sm:$0xf] %v476
    %605 = vst [vmem:[#allocation8 + $0x6c] sm:$0xf] %v477
    %606 = vst [vmem:[#allocation8 + $0x70] sm:$0xf] %v478
    %607 = vst [vmem:[#allocation8 + $0x74] sm:$0xf] %v479
    %608 = vst [vmem:[#allocation8 + $0x78] sm:$0xf] %v480
    %609 = vst [vmem:[#allocation8 + $0x7c] sm:$0xf] %v481
    %610 = vst [vmem:[#allocation8 + $0x80] sm:$0xf] %v482
    %611 = vst [vmem:[#allocation8 + $0x84] sm:$0xf] %v483
    %612 = vst [vmem:[#allocation8 + $0x88] sm:$0xf] %v484
    %613 = vst [vmem:[#allocation8 + $0x8c] sm:$0xf] %v485
    %614 = vst [vmem:[#allocation8 + $0x90] sm:$0xf] %v486
    %615 = vst [vmem:[#allocation8 + $0x94] sm:$0xf] %v487
    %616 = vst [vmem:[#allocation8 + $0x98] sm:$0xf] %v488
    %617 = vst [vmem:[#allocation8 + $0x9c] sm:$0xf] %v489
    %618 = vst [vmem:[#allocation8 + $0xa0] sm:$0xf] %v490
    %619 = vst [vmem:[#allocation8 + $0xa4] sm:$0xf] %v491
    %620 = vst [vmem:[#allocation8 + $0xa8] sm:$0xf] %v492
    %621 = vst [vmem:[#allocation8 + $0xac] sm:$0xf] %v493
    %622 = vst [vmem:[#allocation8 + $0xb0] sm:$0xf] %v494
    %623 = vst [vmem:[#allocation8 + $0xb4] sm:$0xf] %v495
    %624 = vst [vmem:[#allocation8 + $0xb8] sm:$0xf] %v496
    %625 = vst [vmem:[#allocation8 + $0xbc] sm:$0xf] %v497
    %626 = vst [vmem:[#allocation8 + $0xc0] sm:$0xf] %v498
    %627 = vst [vmem:[#allocation8 + $0xc4] sm:$0xf] %v499
    %628 = vst [vmem:[#allocation8 + $0xc8] sm:$0xf] %v500
    %629 = vst [vmem:[#allocation8 + $0xcc] sm:$0xf] %v501
    %630 = vst [vmem:[#allocation8 + $0xd0] sm:$0xf] %v502
    %631 = vst [vmem:[#allocation8 + $0xd4] sm:$0xf] %v503
    %632 = vst [vmem:[#allocation8 + $0xd8] sm:$0xf] %v504
    %633 = vst [vmem:[#allocation8 + $0xdc] sm:$0xf] %v505
    %634 = vst [vmem:[#allocation8 + $0xe0] sm:$0xf] %v506
    %635 = vst [vmem:[#allocation8 + $0xe4] sm:$0xf] %v507
    %636 = vst [vmem:[#allocation8 + $0xe8] sm:$0xf] %v508
    %637 = vst [vmem:[#allocation8 + $0xec] sm:$0xf] %v509
    %638 = vst [vmem:[#allocation8 + $0xf0] sm:$0xf] %v510
    %639 = vst [vmem:[#allocation8 + $0xf4] sm:$0xf] %v511
    %640 = vst [vmem:[#allocation8 + $0xf8] sm:$0xf] %v512
    %641 = vst [vmem:[#allocation8 + $0xfc] sm:$0xf] %v513
    // Predicated region
    $region26: #{basic_block_std.5} parent=1 // pred_check
      _
    $region27: #{basic_block_std.5} parent=1 // pred_check_branch
      %643 = sbr.rel (0) target = $region29
    $region28: #{basic_block_std.5} parent=1 // pred_region
      %s645 = ssub.s32 4096, 4096
      %646 = vsyncadd [#allocation4], %s645
      %s647 = sshll.u32 [#allocation8], 4
      %s648 = int_to_ptr.vmem [resolvable:$true] %s647
      %653 = dma.vmem_to_hbm [thread:$0]  %s648, 4096, %s3, [#allocation4], 64, 64, 4
    $region29: #{basic_block_std.5} parent=1 // pred_fallthru
      _
    // Predicated region
    $region30: #{basic_block_std.5} parent=1 // pred_check
      _
    $region31: #{basic_block_std.5} parent=1 // pred_check_branch
      %655 = sbr.rel (0) target = $region33
    $region32: #{basic_block_std.5} parent=1 // pred_region
      %656 = dma.done [#allocation4], 4096
    $region33: #{basic_block_std.5} parent=1 // pred_fallthru
      _
    %657 = vsyncpa [#allocation3], 1
    %658 = vsyncpa [#allocation6], 1
    %659 = vsyncpa [#allocation4], 1

// kernel: basic_block_std.4
$region0: #{basic_block_std.4}
  #allocation0 [shape = 'u32[]', space=smem, size = 0x4, offset = 0x4, fixed_abs, tag = 'smem constant byte address 0x4 - core index']
  #allocation1 [shape = 'u32[144,128]{1,0:T(1,128)}', space=vmem, size = 0x12000, scoped, tag = 'internal scratch']
  #allocation2 [shape = 'f32[512,128]{1,0:T(8,128)}', space=vmem, size = 0x40000, scoped, tag = 'scratch operand']
  %s0 = inlined_call_operand.hbm [shape: bf16[512,128], index: 0, kind: input, shape index: {}]
  %s1 = inlined_call_operand.hbm [shape: bf16[128,128], index: 1, kind: input, shape index: {}]
  %s2 = inlined_call_operand.hbm [shape: f32[512,128], index: 2, kind: output, shape index: {0}]
  %s3 = inlined_call_operand.hbm [shape: f32[8,128], index: 3, kind: output, shape index: {1}]
  %s4 = inlined_call_operand.hbm [shape: f32[8,128], index: 4, kind: output, shape index: {2}]
  %5 = xla_tuple %s2, %s3, %s4
  %s6 = sld [smem:[#allocation0]]
  $region50: #{basic_block_std.4} parent=0
    _
  %s8 = ssub.s32 1, %s6
  %s9 = scalar_select 0, %s8, %s6
  $region1: #{basic_block_std.4} parent=0
    #allocation3 [shape = 'u8[131072]{0}', space=vmem, size = 0x20000, scoped, tag = 'input window, operand 0, single buffered']
    #allocation4 [shape = 's32[1]{0}', space=sflag, size = 0x4, scoped, tag = 'scoped memory for basic_block_std.4']
    #allocation5 [shape = 's32[1]{0}', space=sflag, size = 0x4, scoped, tag = 'scoped memory for basic_block_std.4']
    #allocation6 [shape = 'u8[32768]{0}', space=vmem, size = 0x8000, scoped, tag = 'input window, operand 1, single buffered']
    #allocation7 [shape = 's32[1]{0}', space=sflag, size = 0x4, scoped, tag = 'scoped memory for basic_block_std.4']
    #allocation8 [shape = 'u8[262144]{0}', space=vmem, size = 0x40000, scoped, tag = 'output window, operand 0, single buffered']
    #allocation9 [shape = 'u8[4096]{0}', space=vmem, size = 0x1000, scoped, tag = 'output window, operand 1, single buffered']
    #allocation10 [shape = 's32[1]{0}', space=sflag, size = 0x4, scoped, tag = 'scoped memory for basic_block_std.4']
    #allocation11 [shape = 'u8[4096]{0}', space=vmem, size = 0x1000, scoped, tag = 'output window, operand 2, single buffered']
    %10 = vsyncpa [#allocation4], 0
    %11 = vsyncpa [#allocation7], 0
    %12 = vsyncpa [#allocation5], 0
    %13 = vsyncpa [#allocation10], 0
    // Predicated region
    $region2: #{basic_block_std.4} parent=1 // pred_check
      _
    $region3: #{basic_block_std.4} parent=1 // pred_check_branch
      %15 = sbr.rel (0) target = $region5
    $region4: #{basic_block_std.4} parent=1 // pred_region
      %s17 = ssub.s32 4096, 4096
      %18 = vsyncadd [#allocation4], %s17
      %s19 = sshll.u32 [#allocation3], 4
      %s20 = int_to_ptr.vmem [resolvable:$true] %s19
      %25 = dma.hbm_to_vmem [thread:$0]  %s0, 4096, %s20, [#allocation4], 64, 64, 4
    $region5: #{basic_block_std.4} parent=1 // pred_fallthru
      _
    // Predicated region
    $region6: #{basic_block_std.4} parent=1 // pred_check
      _
    $region7: #{basic_block_std.4} parent=1 // pred_check_branch
      %27 = sbr.rel (0) target = $region9
    $region8: #{basic_block_std.4} parent=1 // pred_region
      %s29 = ssub.s32 1024, 1024
      %30 = vsyncadd [#allocation7], %s29
      %s31 = sshll.u32 [#allocation6], 4
      %s32 = int_to_ptr.vmem [resolvable:$true] %s31
      %37 = dma.hbm_to_vmem [thread:$0]  %s1, 1024, %s32, [#allocation7], 64, 64, 4
    $region9: #{basic_block_std.4} parent=1 // pred_fallthru
      _
    // Predicated region
    $region10: #{basic_block_std.4} parent=1 // pred_check
      _
    $region11: #{basic_block_std.4} parent=1 // pred_check_branch
      %39 = sbr.rel (0) target = $region13
    $region12: #{basic_block_std.4} parent=1 // pred_region
      %40 = dma.done [#allocation4], 4096
    $region13: #{basic_block_std.4} parent=1 // pred_fallthru
      _
    // Predicated region
    $region14: #{basic_block_std.4} parent=1 // pred_check
      _
    $region15: #{basic_block_std.4} parent=1 // pred_check_branch
      %42 = sbr.rel (0) target = $region17
    $region16: #{basic_block_std.4} parent=1 // pred_region
      %43 = dma.done [#allocation7], 1024
    $region17: #{basic_block_std.4} parent=1 // pred_fallthru
      _
    %p45 = scmp.eq.s32.totalorder 0, 0
    // Predicated region
    $region18: #{basic_block_std.4} parent=1 // pred_check
      %p46 = pneg %p45
    $region19: #{basic_block_std.4} parent=1 // pred_check_branch
      %48 = sbr.rel (%p46) target = $region21
    $region20: #{basic_block_std.4} parent=1 // pred_region
      %49 = vst [vmem:[#allocation2] sm:$0xff] 0.0
      %50 = vst [vmem:[#allocation2 + $0x8] sm:$0xff] 0.0
      %51 = vst [vmem:[#allocation2 + $0x10] sm:$0xff] 0.0
      %52 = vst [vmem:[#allocation2 + $0x18] sm:$0xff] 0.0
      %53 = vst [vmem:[#allocation2 + $0x20] sm:$0xff] 0.0
      %54 = vst [vmem:[#allocation2 + $0x28] sm:$0xff] 0.0
      %55 = vst [vmem:[#allocation2 + $0x30] sm:$0xff] 0.0
      %56 = vst [vmem:[#allocation2 + $0x38] sm:$0xff] 0.0
      %57 = vst [vmem:[#allocation2 + $0x40] sm:$0xff] 0.0
      %58 = vst [vmem:[#allocation2 + $0x48] sm:$0xff] 0.0
      %59 = vst [vmem:[#allocation2 + $0x50] sm:$0xff] 0.0
      %60 = vst [vmem:[#allocation2 + $0x58] sm:$0xff] 0.0
      %61 = vst [vmem:[#allocation2 + $0x60] sm:$0xff] 0.0
      %62 = vst [vmem:[#allocation2 + $0x68] sm:$0xff] 0.0
      %63 = vst [vmem:[#allocation2 + $0x70] sm:$0xff] 0.0
      %64 = vst [vmem:[#allocation2 + $0x78] sm:$0xff] 0.0
      %65 = vst [vmem:[#allocation2 + $0x80] sm:$0xff] 0.0
      %66 = vst [vmem:[#allocation2 + $0x88] sm:$0xff] 0.0
      %67 = vst [vmem:[#allocation2 + $0x90] sm:$0xff] 0.0
      %68 = vst [vmem:[#allocation2 + $0x98] sm:$0xff] 0.0
      %69 = vst [vmem:[#allocation2 + $0xa0] sm:$0xff] 0.0
      %70 = vst [vmem:[#allocation2 + $0xa8] sm:$0xff] 0.0
      %71 = vst [vmem:[#allocation2 + $0xb0] sm:$0xff] 0.0
      %72 = vst [vmem:[#allocation2 + $0xb8] sm:$0xff] 0.0
      %73 = vst [vmem:[#allocation2 + $0xc0] sm:$0xff] 0.0
      %74 = vst [vmem:[#allocation2 + $0xc8] sm:$0xff] 0.0
      %75 = vst [vmem:[#allocation2 + $0xd0] sm:$0xff] 0.0
      %76 = vst [vmem:[#allocation2 + $0xd8] sm:$0xff] 0.0
      %77 = vst [vmem:[#allocation2 + $0xe0] sm:$0xff] 0.0
      %78 = vst [vmem:[#allocation2 + $0xe8] sm:$0xff] 0.0
      %79 = vst [vmem:[#allocation2 + $0xf0] sm:$0xff] 0.0
      %80 = vst [vmem:[#allocation2 + $0xf8] sm:$0xff] 0.0
      %81 = vst [vmem:[#allocation2 + $0x100] sm:$0xff] 0.0
      %82 = vst [vmem:[#allocation2 + $0x108] sm:$0xff] 0.0
      %83 = vst [vmem:[#allocation2 + $0x110] sm:$0xff] 0.0
      %84 = vst [vmem:[#allocation2 + $0x118] sm:$0xff] 0.0
      %85 = vst [vmem:[#allocation2 + $0x120] sm:$0xff] 0.0
      %86 = vst [vmem:[#allocation2 + $0x128] sm:$0xff] 0.0
      %87 = vst [vmem:[#allocation2 + $0x130] sm:$0xff] 0.0
      %88 = vst [vmem:[#allocation2 + $0x138] sm:$0xff] 0.0
      %89 = vst [vmem:[#allocation2 + $0x140] sm:$0xff] 0.0
      %90 = vst [vmem:[#allocation2 + $0x148] sm:$0xff] 0.0
      %91 = vst [vmem:[#allocation2 + $0x150] sm:$0xff] 0.0
      %92 = vst [vmem:[#allocation2 + $0x158] sm:$0xff] 0.0
      %93 = vst [vmem:[#allocation2 + $0x160] sm:$0xff] 0.0
      %94 = vst [vmem:[#allocation2 + $0x168] sm:$0xff] 0.0
      %95 = vst [vmem:[#allocation2 + $0x170] sm:$0xff] 0.0
      %96 = vst [vmem:[#allocation2 + $0x178] sm:$0xff] 0.0
      %97 = vst [vmem:[#allocation2 + $0x180] sm:$0xff] 0.0
      %98 = vst [vmem:[#allocation2 + $0x188] sm:$0xff] 0.0
      %99 = vst [vmem:[#allocation2 + $0x190] sm:$0xff] 0.0
      %100 = vst [vmem:[#allocation2 + $0x198] sm:$0xff] 0.0
      %101 = vst [vmem:[#allocation2 + $0x1a0] sm:$0xff] 0.0
      %102 = vst [vmem:[#allocation2 + $0x1a8] sm:$0xff] 0.0
      %103 = vst [vmem:[#allocation2 + $0x1b0] sm:$0xff] 0.0
      %104 = vst [vmem:[#allocation2 + $0x1b8] sm:$0xff] 0.0
      %105 = vst [vmem:[#allocation2 + $0x1c0] sm:$0xff] 0.0
      %106 = vst [vmem:[#allocation2 + $0x1c8] sm:$0xff] 0.0
      %107 = vst [vmem:[#allocation2 + $0x1d0] sm:$0xff] 0.0
      %108 = vst [vmem:[#allocation2 + $0x1d8] sm:$0xff] 0.0
      %109 = vst [vmem:[#allocation2 + $0x1e0] sm:$0xff] 0.0
      %110 = vst [vmem:[#allocation2 + $0x1e8] sm:$0xff] 0.0
      %111 = vst [vmem:[#allocation2 + $0x1f0] sm:$0xff] 0.0
      %112 = vst [vmem:[#allocation2 + $0x1f8] sm:$0xff] 0.0
    $region21: #{basic_block_std.4} parent=1 // pred_fallthru
      _
    %v113 = vld [vmem:[#allocation2] sm:$0xff]
    %v114 = vld [vmem:[#allocation2 + $0x8] sm:$0xff]
    %v115 = vld [vmem:[#allocation2 + $0x10] sm:$0xff]
    %v116 = vld [vmem:[#allocation2 + $0x18] sm:$0xff]
    %v117 = vld [vmem:[#allocation2 + $0x20] sm:$0xff]
    %v118 = vld [vmem:[#allocation2 + $0x28] sm:$0xff]
    %v119 = vld [vmem:[#allocation2 + $0x30] sm:$0xff]
    %v120 = vld [vmem:[#allocation2 + $0x38] sm:$0xff]
    %v121 = vld [vmem:[#allocation2 + $0x40] sm:$0xff]
    %v122 = vld [vmem:[#allocation2 + $0x48] sm:$0xff]
    %v123 = vld [vmem:[#allocation2 + $0x50] sm:$0xff]
    %v124 = vld [vmem:[#allocation2 + $0x58] sm:$0xff]
    %v125 = vld [vmem:[#allocation2 + $0x60] sm:$0xff]
    %v126 = vld [vmem:[#allocation2 + $0x68] sm:$0xff]
    %v127 = vld [vmem:[#allocation2 + $0x70] sm:$0xff]
    %v128 = vld [vmem:[#allocation2 + $0x78] sm:$0xff]
    %v129 = vld [vmem:[#allocation2 + $0x80] sm:$0xff]
    %v130 = vld [vmem:[#allocation2 + $0x88] sm:$0xff]
    %v131 = vld [vmem:[#allocation2 + $0x90] sm:$0xff]
    %v132 = vld [vmem:[#allocation2 + $0x98] sm:$0xff]
    %v133 = vld [vmem:[#allocation2 + $0xa0] sm:$0xff]
    %v134 = vld [vmem:[#allocation2 + $0xa8] sm:$0xff]
    %v135 = vld [vmem:[#allocation2 + $0xb0] sm:$0xff]
    %v136 = vld [vmem:[#allocation2 + $0xb8] sm:$0xff]
    %v137 = vld [vmem:[#allocation2 + $0xc0] sm:$0xff]
    %v138 = vld [vmem:[#allocation2 + $0xc8] sm:$0xff]
    %v139 = vld [vmem:[#allocation2 + $0xd0] sm:$0xff]
    %v140 = vld [vmem:[#allocation2 + $0xd8] sm:$0xff]
    %v141 = vld [vmem:[#allocation2 + $0xe0] sm:$0xff]
    %v142 = vld [vmem:[#allocation2 + $0xe8] sm:$0xff]
    %v143 = vld [vmem:[#allocation2 + $0xf0] sm:$0xff]
    %v144 = vld [vmem:[#allocation2 + $0xf8] sm:$0xff]
    %v145 = vld [vmem:[#allocation2 + $0x100] sm:$0xff]
    %v146 = vld [vmem:[#allocation2 + $0x108] sm:$0xff]
    %v147 = vld [vmem:[#allocation2 + $0x110] sm:$0xff]
    %v148 = vld [vmem:[#allocation2 + $0x118] sm:$0xff]
    %v149 = vld [vmem:[#allocation2 + $0x120] sm:$0xff]
    %v150 = vld [vmem:[#allocation2 + $0x128] sm:$0xff]
    %v151 = vld [vmem:[#allocation2 + $0x130] sm:$0xff]
    %v152 = vld [vmem:[#allocation2 + $0x138] sm:$0xff]
    %v153 = vld [vmem:[#allocation2 + $0x140] sm:$0xff]
    %v154 = vld [vmem:[#allocation2 + $0x148] sm:$0xff]
    %v155 = vld [vmem:[#allocation2 + $0x150] sm:$0xff]
    %v156 = vld [vmem:[#allocation2 + $0x158] sm:$0xff]
    %v157 = vld [vmem:[#allocation2 + $0x160] sm:$0xff]
    %v158 = vld [vmem:[#allocation2 + $0x168] sm:$0xff]
    %v159 = vld [vmem:[#allocation2 + $0x170] sm:$0xff]
    %v160 = vld [vmem:[#allocation2 + $0x178] sm:$0xff]
    %v161 = vld [vmem:[#allocation2 + $0x180] sm:$0xff]
    %v162 = vld [vmem:[#allocation2 + $0x188] sm:$0xff]
    %v163 = vld [vmem:[#allocation2 + $0x190] sm:$0xff]
    %v164 = vld [vmem:[#allocation2 + $0x198] sm:$0xff]
    %v165 = vld [vmem:[#allocation2 + $0x1a0] sm:$0xff]
    %v166 = vld [vmem:[#allocation2 + $0x1a8] sm:$0xff]
    %v167 = vld [vmem:[#allocation2 + $0x1b0] sm:$0xff]
    %v168 = vld [vmem:[#allocation2 + $0x1b8] sm:$0xff]
    %v169 = vld [vmem:[#allocation2 + $0x1c0] sm:$0xff]
    %v170 = vld [vmem:[#allocation2 + $0x1c8] sm:$0xff]
    %v171 = vld [vmem:[#allocation2 + $0x1d0] sm:$0xff]
    %v172 = vld [vmem:[#allocation2 + $0x1d8] sm:$0xff]
    %v173 = vld [vmem:[#allocation2 + $0x1e0] sm:$0xff]
    %v174 = vld [vmem:[#allocation2 + $0x1e8] sm:$0xff]
    %v175 = vld [vmem:[#allocation2 + $0x1f0] sm:$0xff]
    %v176 = vld [vmem:[#allocation2 + $0x1f8] sm:$0xff]
    %v177 = vld [vmem:[#allocation3] sm:$0xf]
    %v178 = vld [vmem:[#allocation3 + $0x4] sm:$0xf]
    %v179 = vld [vmem:[#allocation3 + $0x8] sm:$0xf]
    %v180 = vld [vmem:[#allocation3 + $0xc] sm:$0xf]
    %v181 = vld [vmem:[#allocation3 + $0x10] sm:$0xf]
    %v182 = vld [vmem:[#allocation3 + $0x14] sm:$0xf]
    %v183 = vld [vmem:[#allocation3 + $0x18] sm:$0xf]
    %v184 = vld [vmem:[#allocation3 + $0x1c] sm:$0xf]
    %v185 = vld [vmem:[#allocation3 + $0x20] sm:$0xf]
    %v186 = vld [vmem:[#allocation3 + $0x24] sm:$0xf]
    %v187 = vld [vmem:[#allocation3 + $0x28] sm:$0xf]
    %v188 = vld [vmem:[#allocation3 + $0x2c] sm:$0xf]
    %v189 = vld [vmem:[#allocation3 + $0x30] sm:$0xf]
    %v190 = vld [vmem:[#allocation3 + $0x34] sm:$0xf]
    %v191 = vld [vmem:[#allocation3 + $0x38] sm:$0xf]
    %v192 = vld [vmem:[#allocation3 + $0x3c] sm:$0xf]
    %v193 = vld [vmem:[#allocation3 + $0x40] sm:$0xf]
    %v194 = vld [vmem:[#allocation3 + $0x44] sm:$0xf]
    %v195 = vld [vmem:[#allocation3 + $0x48] sm:$0xf]
    %v196 = vld [vmem:[#allocation3 + $0x4c] sm:$0xf]
    %v197 = vld [vmem:[#allocation3 + $0x50] sm:$0xf]
    %v198 = vld [vmem:[#allocation3 + $0x54] sm:$0xf]
    %v199 = vld [vmem:[#allocation3 + $0x58] sm:$0xf]
    %v200 = vld [vmem:[#allocation3 + $0x5c] sm:$0xf]
    %v201 = vld [vmem:[#allocation3 + $0x60] sm:$0xf]
    %v202 = vld [vmem:[#allocation3 + $0x64] sm:$0xf]
    %v203 = vld [vmem:[#allocation3 + $0x68] sm:$0xf]
    %v204 = vld [vmem:[#allocation3 + $0x6c] sm:$0xf]
    %v205 = vld [vmem:[#allocation3 + $0x70] sm:$0xf]
    %v206 = vld [vmem:[#allocation3 + $0x74] sm:$0xf]
    %v207 = vld [vmem:[#allocation3 + $0x78] sm:$0xf]
    %v208 = vld [vmem:[#allocation3 + $0x7c] sm:$0xf]
    %v209 = vld [vmem:[#allocation3 + $0x80] sm:$0xf]
    %v210 = vld [vmem:[#allocation3 + $0x84] sm:$0xf]
    %v211 = vld [vmem:[#allocation3 + $0x88] sm:$0xf]
    %v212 = vld [vmem:[#allocation3 + $0x8c] sm:$0xf]
    %v213 = vld [vmem:[#allocation3 + $0x90] sm:$0xf]
    %v214 = vld [vmem:[#allocation3 + $0x94] sm:$0xf]
    %v215 = vld [vmem:[#allocation3 + $0x98] sm:$0xf]
    %v216 = vld [vmem:[#allocation3 + $0x9c] sm:$0xf]
    %v217 = vld [vmem:[#allocation3 + $0xa0] sm:$0xf]
    %v218 = vld [vmem:[#allocation3 + $0xa4] sm:$0xf]
    %v219 = vld [vmem:[#allocation3 + $0xa8] sm:$0xf]
    %v220 = vld [vmem:[#allocation3 + $0xac] sm:$0xf]
    %v221 = vld [vmem:[#allocation3 + $0xb0] sm:$0xf]
    %v222 = vld [vmem:[#allocation3 + $0xb4] sm:$0xf]
    %v223 = vld [vmem:[#allocation3 + $0xb8] sm:$0xf]
    %v224 = vld [vmem:[#allocation3 + $0xbc] sm:$0xf]
    %v225 = vld [vmem:[#allocation3 + $0xc0] sm:$0xf]
    %v226 = vld [vmem:[#allocation3 + $0xc4] sm:$0xf]
    %v227 = vld [vmem:[#allocation3 + $0xc8] sm:$0xf]
    %v228 = vld [vmem:[#allocation3 + $0xcc] sm:$0xf]
    %v229 = vld [vmem:[#allocation3 + $0xd0] sm:$0xf]
    %v230 = vld [vmem:[#allocation3 + $0xd4] sm:$0xf]
    %v231 = vld [vmem:[#allocation3 + $0xd8] sm:$0xf]
    %v232 = vld [vmem:[#allocation3 + $0xdc] sm:$0xf]
    %v233 = vld [vmem:[#allocation3 + $0xe0] sm:$0xf]
    %v234 = vld [vmem:[#allocation3 + $0xe4] sm:$0xf]
    %v235 = vld [vmem:[#allocation3 + $0xe8] sm:$0xf]
    %v236 = vld [vmem:[#allocation3 + $0xec] sm:$0xf]
    %v237 = vld [vmem:[#allocation3 + $0xf0] sm:$0xf]
    %v238 = vld [vmem:[#allocation3 + $0xf4] sm:$0xf]
    %v239 = vld [vmem:[#allocation3 + $0xf8] sm:$0xf]
    %v240 = vld [vmem:[#allocation3 + $0xfc] sm:$0xf]
    %v241 = vld [vmem:[#allocation6] sm:$0xf]
    %v242 = vld [vmem:[#allocation6 + $0x4] sm:$0xf]
    %v243 = vld [vmem:[#allocation6 + $0x8] sm:$0xf]
    %v244 = vld [vmem:[#allocation6 + $0xc] sm:$0xf]
    %v245 = vld [vmem:[#allocation6 + $0x10] sm:$0xf]
    %v246 = vld [vmem:[#allocation6 + $0x14] sm:$0xf]
    %v247 = vld [vmem:[#allocation6 + $0x18] sm:$0xf]
    %v248 = vld [vmem:[#allocation6 + $0x1c] sm:$0xf]
    %v249 = vld [vmem:[#allocation6 + $0x20] sm:$0xf]
    %v250 = vld [vmem:[#allocation6 + $0x24] sm:$0xf]
    %v251 = vld [vmem:[#allocation6 + $0x28] sm:$0xf]
    %v252 = vld [vmem:[#allocation6 + $0x2c] sm:$0xf]
    %v253 = vld [vmem:[#allocation6 + $0x30] sm:$0xf]
    %v254 = vld [vmem:[#allocation6 + $0x34] sm:$0xf]
    %v255 = vld [vmem:[#allocation6 + $0x38] sm:$0xf]
    %v256 = vld [vmem:[#allocation6 + $0x3c] sm:$0xf]
    %v321 = vunpack.c.l.b16 %v177
    %v322 = vunpack.c.l.b16 %v178
    %v323 = vunpack.c.l.b16 %v179
    %v324 = vunpack.c.l.b16 %v180
    %v325 = vunpack.c.l.b16 %v181
    %v326 = vunpack.c.l.b16 %v182
    %v327 = vunpack.c.l.b16 %v183
    %v328 = vunpack.c.l.b16 %v184
    %v329 = vunpack.c.l.b16 %v185
    %v330 = vunpack.c.l.b16 %v186
    %v331 = vunpack.c.l.b16 %v187
    %v332 = vunpack.c.l.b16 %v188
    %v333 = vunpack.c.l.b16 %v189
    %v334 = vunpack.c.l.b16 %v190
    %v335 = vunpack.c.l.b16 %v191
    %v336 = vunpack.c.l.b16 %v192
    %v337 = vunpack.c.l.b16 %v193
    %v338 = vunpack.c.l.b16 %v194
    %v339 = vunpack.c.l.b16 %v195
    %v340 = vunpack.c.l.b16 %v196
    %v341 = vunpack.c.l.b16 %v197
    %v342 = vunpack.c.l.b16 %v198
    %v343 = vunpack.c.l.b16 %v199
    %v344 = vunpack.c.l.b16 %v200
    %v345 = vunpack.c.l.b16 %v201
    %v346 = vunpack.c.l.b16 %v202
    %v347 = vunpack.c.l.b16 %v203
    %v348 = vunpack.c.l.b16 %v204
    %v349 = vunpack.c.l.b16 %v205
    %v350 = vunpack.c.l.b16 %v206
    %v351 = vunpack.c.l.b16 %v207
    %v352 = vunpack.c.l.b16 %v208
    %v353 = vunpack.c.l.b16 %v209
    %v354 = vunpack.c.l.b16 %v210
    %v355 = vunpack.c.l.b16 %v211
    %v356 = vunpack.c.l.b16 %v212
    %v357 = vunpack.c.l.b16 %v213
    %v358 = vunpack.c.l.b16 %v214
    %v359 = vunpack.c.l.b16 %v215
    %v360 = vunpack.c.l.b16 %v216
    %v361 = vunpack.c.l.b16 %v217
    %v362 = vunpack.c.l.b16 %v218
    %v363 = vunpack.c.l.b16 %v219
    %v364 = vunpack.c.l.b16 %v220
    %v365 = vunpack.c.l.b16 %v221
    %v366 = vunpack.c.l.b16 %v222
    %v367 = vunpack.c.l.b16 %v223
    %v368 = vunpack.c.l.b16 %v224
    %v369 = vunpack.c.l.b16 %v225
    %v370 = vunpack.c.l.b16 %v226
    %v371 = vunpack.c.l.b16 %v227
    %v372 = vunpack.c.l.b16 %v228
    %v373 = vunpack.c.l.b16 %v229
    %v374 = vunpack.c.l.b16 %v230
    %v375 = vunpack.c.l.b16 %v231
    %v376 = vunpack.c.l.b16 %v232
    %v377 = vunpack.c.l.b16 %v233
    %v378 = vunpack.c.l.b16 %v234
    %v379 = vunpack.c.l.b16 %v235
    %v380 = vunpack.c.l.b16 %v236
    %v381 = vunpack.c.l.b16 %v237
    %v382 = vunpack.c.l.b16 %v238
    %v383 = vunpack.c.l.b16 %v239
    %v384 = vunpack.c.l.b16 %v240
    %v385 = vpack.c.b16 %v322, %v321
    %v386 = vpack.c.b16 %v324, %v323
    %v387 = vpack.c.b16 %v326, %v325
    %v388 = vpack.c.b16 %v328, %v327
    %v389 = vpack.c.b16 %v330, %v329
    %v390 = vpack.c.b16 %v332, %v331
    %v391 = vpack.c.b16 %v334, %v333
    %v392 = vpack.c.b16 %v336, %v335
    %v393 = vpack.c.b16 %v338, %v337
    %v394 = vpack.c.b16 %v340, %v339
    %v395 = vpack.c.b16 %v342, %v341
    %v396 = vpack.c.b16 %v344, %v343
    %v397 = vpack.c.b16 %v346, %v345
    %v398 = vpack.c.b16 %v348, %v347
    %v399 = vpack.c.b16 %v350, %v349
    %v400 = vpack.c.b16 %v352, %v351
    %v401 = vpack.c.b16 %v354, %v353
    %v402 = vpack.c.b16 %v356, %v355
    %v403 = vpack.c.b16 %v358, %v357
    %v404 = vpack.c.b16 %v360, %v359
    %v405 = vpack.c.b16 %v362, %v361
    %v406 = vpack.c.b16 %v364, %v363
    %v407 = vpack.c.b16 %v366, %v365
    %v408 = vpack.c.b16 %v368, %v367
    %v409 = vpack.c.b16 %v370, %v369
    %v410 = vpack.c.b16 %v372, %v371
    %v411 = vpack.c.b16 %v374, %v373
    %v412 = vpack.c.b16 %v376, %v375
    %v413 = vpack.c.b16 %v378, %v377
    %v414 = vpack.c.b16 %v380, %v379
    %v415 = vpack.c.b16 %v382, %v381
    %v416 = vpack.c.b16 %v384, %v383
    %v465 = vunpack.c.l.b16 %v241
    %v466 = vunpack.c.l.b16 %v242
    %v467 = vunpack.c.l.b16 %v243
    %v468 = vunpack.c.l.b16 %v244
    %v469 = vunpack.c.l.b16 %v245
    %v470 = vunpack.c.l.b16 %v246
    %v471 = vunpack.c.l.b16 %v247
    %v472 = vunpack.c.l.b16 %v248
    %v473 = vunpack.c.l.b16 %v249
    %v474 = vunpack.c.l.b16 %v250
    %v475 = vunpack.c.l.b16 %v251
    %v476 = vunpack.c.l.b16 %v252
    %v477 = vunpack.c.l.b16 %v253
    %v478 = vunpack.c.l.b16 %v254
    %v479 = vunpack.c.l.b16 %v255
    %v480 = vunpack.c.l.b16 %v256
    %v481 = vpack.c.b16 %v466, %v465
    %v482 = vpack.c.b16 %v468, %v467
    %v483 = vpack.c.b16 %v470, %v469
    %v484 = vpack.c.b16 %v472, %v471
    %v485 = vpack.c.b16 %v474, %v473
    %v486 = vpack.c.b16 %v476, %v475
    %v487 = vpack.c.b16 %v478, %v477
    %v488 = vpack.c.b16 %v480, %v479
    %497 = vmatprep.subr.bf16.mxu0 0
    %498 = vmatpush1.bf16.msra.mxu0 %v481
    %499 = vmatprep.subr.bf16.mxu0 0
    %500 = vmatpush1.bf16.msra.mxu0 %v482
    %501 = vmatprep.subr.bf16.mxu0 0
    %502 = vmatpush1.bf16.msra.mxu0 %v483
    %503 = vmatprep.subr.bf16.mxu0 0
    %504 = vmatpush1.bf16.msra.mxu0 %v484
    %505 = vmatprep.subr.bf16.mxu0 0
    %506 = vmatpush1.bf16.msra.mxu0 %v485
    %507 = vmatprep.subr.bf16.mxu0 0
    %508 = vmatpush1.bf16.msra.mxu0 %v486
    %509 = vmatprep.subr.bf16.mxu0 0
    %510 = vmatpush1.bf16.msra.mxu0 %v487
    %511 = vmatprep.subr.bf16.mxu0 0
    %512 = vmatpush1.bf16.msra.mxu0 %v488
    %513 = vmatprep.subr.bf16.mxu0 0
    %514 = vmatpush1.bf16.msra.mxu0 0
    %515 = vmatprep.subr.bf16.mxu0 0
    %516 = vmatpush1.bf16.msra.mxu0 0
    %517 = vmatprep.subr.bf16.mxu0 0
    %518 = vmatpush1.bf16.msra.mxu0 0
    %519 = vmatprep.subr.bf16.mxu0 0
    %520 = vmatpush1.bf16.msra.mxu0 0
    %521 = vmatprep.subr.bf16.mxu0 0
    %522 = vmatpush1.bf16.msra.mxu0 0
    %523 = vmatprep.subr.bf16.mxu0 0
    %524 = vmatpush1.bf16.msra.mxu0 0
    %525 = vmatprep.subr.bf16.mxu0 0
    %526 = vmatpush1.bf16.msra.mxu0 0
    %527 = vmatprep.subr.bf16.mxu0 0
    %528 = vmatpush1.bf16.msra.mxu0 0
    %529 = vmatprep.mubr.bf16.mxu0 0
    %530 = vmatmul.mubr.bf16.gmra.mrb[0].mxu0 %v385
    %v531 = vpop.f32.mrb[0].mxu0
    %v532 = vadd.f32 0.0, %v531
    %v533 = vpop.f32.mrb[0].mxu0
    %v534 = vpop.f32.mrb[0].mxu0
    %v535 = vadd.f32 0.0, %v534
    %v536 = vpop.f32.mrb[0].mxu0
    %537 = vmatprep.mubr.bf16.mxu0 0
    %538 = vmatmul.mubr.bf16.gmra.mrb[0].mxu0 %v386
    %v539 = vpop.f32.mrb[0].mxu0
    %v540 = vadd.f32 0.0, %v539
    %v541 = vpop.f32.mrb[0].mxu0
    %v542 = vpop.f32.mrb[0].mxu0
    %v543 = vadd.f32 0.0, %v542
    %v544 = vpop.f32.mrb[0].mxu0
    %545 = vmatprep.mubr.bf16.mxu0 0
    %546 = vmatmul.mubr.bf16.gmra.mrb[0].mxu0 %v387
    %v547 = vpop.f32.mrb[0].mxu0
    %v548 = vadd.f32 0.0, %v547
    %v549 = vpop.f32.mrb[0].mxu0
    %v550 = vpop.f32.mrb[0].mxu0
    %v551 = vadd.f32 0.0, %v550
    %v552 = vpop.f32.mrb[0].mxu0
    %553 = vmatprep.mubr.bf16.mxu0 0
    %554 = vmatmul.mubr.bf16.gmra.mrb[0].mxu0 %v388
    %v555 = vpop.f32.mrb[0].mxu0
    %v556 = vadd.f32 0.0, %v555
    %v557 = vpop.f32.mrb[0].mxu0
    %v558 = vpop.f32.mrb[0].mxu0
    %v559 = vadd.f32 0.0, %v558
    %v560 = vpop.f32.mrb[0].mxu0
    %561 = vmatprep.mubr.bf16.mxu0 0
    %562 = vmatmul.mubr.bf16.gmra.mrb[0].mxu0 %v389
    %v563 = vpop.f32.mrb[0].mxu0
    %v564 = vadd.f32 0.0, %v563
    %v565 = vpop.f32.mrb[0].mxu0
    %v566 = vpop.f32.mrb[0].mxu0
    %v567 = vadd.f32 0.0, %v566
    %v568 = vpop.f32.mrb[0].mxu0
    %569 = vmatprep.mubr.bf16.mxu0 0
    %570 = vmatmul.mubr.bf16.gmra.mrb[0].mxu0 %v390
    %v571 = vpop.f32.mrb[0].mxu0
    %v572 = vadd.f32 0.0, %v571
    %v573 = vpop.f32.mrb[0].mxu0
    %v574 = vpop.f32.mrb[0].mxu0
    %v575 = vadd.f32 0.0, %v574
    %v576 = vpop.f32.mrb[0].mxu0
    %577 = vmatprep.mubr.bf16.mxu0 0
    %578 = vmatmul.mubr.bf16.gmra.mrb[0].mxu0 %v391
    %v579 = vpop.f32.mrb[0].mxu0
    %v580 = vadd.f32 0.0, %v579
    %v581 = vpop.f32.mrb[0].mxu0
    %v582 = vpop.f32.mrb[0].mxu0
    %v583 = vadd.f32 0.0, %v582
    %v584 = vpop.f32.mrb[0].mxu0
    %585 = vmatprep.mubr.bf16.mxu0 0
    %586 = vmatmul.mubr.bf16.gmra.mrb[0].mxu0 %v392
    %v587 = vpop.f32.mrb[0].mxu0
    %v588 = vadd.f32 0.0, %v587
    %v589 = vpop.f32.mrb[0].mxu0
    %v590 = vpop.f32.mrb[0].mxu0
    %v591 = vadd.f32 0.0, %v590
    %v592 = vpop.f32.mrb[0].mxu0
    %593 = vmatprep.mubr.bf16.mxu0 0
    %594 = vmatmul.mubr.bf16.gmra.mrb[0].mxu0 %v393
    %v595 = vpop.f32.mrb[0].mxu0
    %v596 = vadd.f32 0.0, %v595
    %v597 = vpop.f32.mrb[0].mxu0
    %v598 = vpop.f32.mrb[0].mxu0
    %v599 = vadd.f32 0.0, %v598
    %v600 = vpop.f32.mrb[0].mxu0
    %601 = vmatprep.mubr.bf16.mxu0 0
    %602 = vmatmul.mubr.bf16.gmra.mrb[0].mxu0 %v394
    %v603 = vpop.f32.mrb[0].mxu0
    %v604 = vadd.f32 0.0, %v603
    %v605 = vpop.f32.mrb[0].mxu0
    %v606 = vpop.f32.mrb[0].mxu0
    %v607 = vadd.f32 0.0, %v606
    %v608 = vpop.f32.mrb[0].mxu0
    %609 = vmatprep.mubr.bf16.mxu0 0
    %610 = vmatmul.mubr.bf16.gmra.mrb[0].mxu0 %v395
    %v611 = vpop.f32.mrb[0].mxu0
    %v612 = vadd.f32 0.0, %v611
    %v613 = vpop.f32.mrb[0].mxu0
    %v614 = vpop.f32.mrb[0].mxu0
    %v615 = vadd.f32 0.0, %v614
    %v616 = vpop.f32.mrb[0].mxu0
    %617 = vmatprep.mubr.bf16.mxu0 0
    %618 = vmatmul.mubr.bf16.gmra.mrb[0].mxu0 %v396
    %v619 = vpop.f32.mrb[0].mxu0
    %v620 = vadd.f32 0.0, %v619
    %v621 = vpop.f32.mrb[0].mxu0
    %v622 = vpop.f32.mrb[0].mxu0
    %v623 = vadd.f32 0.0, %v622
    %v624 = vpop.f32.mrb[0].mxu0
    %625 = vmatprep.mubr.bf16.mxu0 0
    %626 = vmatmul.mubr.bf16.gmra.mrb[0].mxu0 %v397
    %v627 = vpop.f32.mrb[0].mxu0
    %v628 = vadd.f32 0.0, %v627
    %v629 = vpop.f32.mrb[0].mxu0
    %v630 = vpop.f32.mrb[0].mxu0
    %v631 = vadd.f32 0.0, %v630
    %v632 = vpop.f32.mrb[0].mxu0
    %633 = vmatprep.mubr.bf16.mxu0 0
    %634 = vmatmul.mubr.bf16.gmra.mrb[0].mxu0 %v398
    %v635 = vpop.f32.mrb[0].mxu0
    %v636 = vadd.f32 0.0, %v635
    %v637 = vpop.f32.mrb[0].mxu0
    %v638 = vpop.f32.mrb[0].mxu0
    %v639 = vadd.f32 0.0, %v638
    %v640 = vpop.f32.mrb[0].mxu0
    %641 = vmatprep.mubr.bf16.mxu0 0
    %642 = vmatmul.mubr.bf16.gmra.mrb[0].mxu0 %v399
    %v643 = vpop.f32.mrb[0].mxu0
    %v644 = vadd.f32 0.0, %v643
    %v645 = vpop.f32.mrb[0].mxu0
    %v646 = vpop.f32.mrb[0].mxu0
    %v647 = vadd.f32 0.0, %v646
    %v648 = vpop.f32.mrb[0].mxu0
    %649 = vmatprep.mubr.bf16.mxu0 0
    %650 = vmatmul.mubr.bf16.gmra.mrb[0].mxu0 %v400
    %v651 = vpop.f32.mrb[0].mxu0
    %v652 = vadd.f32 0.0, %v651
    %v653 = vpop.f32.mrb[0].mxu0
    %v654 = vpop.f32.mrb[0].mxu0
    %v655 = vadd.f32 0.0, %v654
    %v656 = vpop.f32.mrb[0].mxu0
    %657 = vmatprep.mubr.bf16.mxu0 0
    %658 = vmatmul.mubr.bf16.gmra.mrb[0].mxu0 %v401
    %v659 = vpop.f32.mrb[0].mxu0
    %v660 = vadd.f32 0.0, %v659
    %v661 = vpop.f32.mrb[0].mxu0
    %v662 = vpop.f32.mrb[0].mxu0
    %v663 = vadd.f32 0.0, %v662
    %v664 = vpop.f32.mrb[0].mxu0
    %665 = vmatprep.mubr.bf16.mxu0 0
    %666 = vmatmul.mubr.bf16.gmra.mrb[0].mxu0 %v402
    %v667 = vpop.f32.mrb[0].mxu0
    %v668 = vadd.f32 0.0, %v667
    %v669 = vpop.f32.mrb[0].mxu0
    %v670 = vpop.f32.mrb[0].mxu0
    %v671 = vadd.f32 0.0, %v670
    %v672 = vpop.f32.mrb[0].mxu0
    %673 = vmatprep.mubr.bf16.mxu0 0
    %674 = vmatmul.mubr.bf16.gmra.mrb[0].mxu0 %v403
    %v675 = vpop.f32.mrb[0].mxu0
    %v676 = vadd.f32 0.0, %v675
    %v677 = vpop.f32.mrb[0].mxu0
    %v678 = vpop.f32.mrb[0].mxu0
    %v679 = vadd.f32 0.0, %v678
    %v680 = vpop.f32.mrb[0].mxu0
    %681 = vmatprep.mubr.bf16.mxu0 0
    %682 = vmatmul.mubr.bf16.gmra.mrb[0].mxu0 %v404
    %v683 = vpop.f32.mrb[0].mxu0
    %v684 = vadd.f32 0.0, %v683
    %v685 = vpop.f32.mrb[0].mxu0
    %v686 = vpop.f32.mrb[0].mxu0
    %v687 = vadd.f32 0.0, %v686
    %v688 = vpop.f32.mrb[0].mxu0
    %689 = vmatprep.mubr.bf16.mxu0 0
    %690 = vmatmul.mubr.bf16.gmra.mrb[0].mxu0 %v405
    %v691 = vpop.f32.mrb[0].mxu0
    %v692 = vadd.f32 0.0, %v691
    %v693 = vpop.f32.mrb[0].mxu0
    %v694 = vpop.f32.mrb[0].mxu0
    %v695 = vadd.f32 0.0, %v694
    %v696 = vpop.f32.mrb[0].mxu0
    %697 = vmatprep.mubr.bf16.mxu0 0
    %698 = vmatmul.mubr.bf16.gmra.mrb[0].mxu0 %v406
    %v699 = vpop.f32.mrb[0].mxu0
    %v700 = vadd.f32 0.0, %v699
    %v701 = vpop.f32.mrb[0].mxu0
    %v702 = vpop.f32.mrb[0].mxu0
    %v703 = vadd.f32 0.0, %v702
    %v704 = vpop.f32.mrb[0].mxu0
    %705 = vmatprep.mubr.bf16.mxu0 0
    %706 = vmatmul.mubr.bf16.gmra.mrb[0].mxu0 %v407
    %v707 = vpop.f32.mrb[0].mxu0
    %v708 = vadd.f32 0.0, %v707
    %v709 = vpop.f32.mrb[0].mxu0
    %v710 = vpop.f32.mrb[0].mxu0
    %v711 = vadd.f32 0.0, %v710
    %v712 = vpop.f32.mrb[0].mxu0
    %713 = vmatprep.mubr.bf16.mxu0 0
    %714 = vmatmul.mubr.bf16.gmra.mrb[0].mxu0 %v408
    %v715 = vpop.f32.mrb[0].mxu0
    %v716 = vadd.f32 0.0, %v715
    %v717 = vpop.f32.mrb[0].mxu0
    %v718 = vpop.f32.mrb[0].mxu0
    %v719 = vadd.f32 0.0, %v718
    %v720 = vpop.f32.mrb[0].mxu0
    %721 = vmatprep.mubr.bf16.mxu0 0
    %722 = vmatmul.mubr.bf16.gmra.mrb[0].mxu0 %v409
    %v723 = vpop.f32.mrb[0].mxu0
    %v724 = vadd.f32 0.0, %v723
    %v725 = vpop.f32.mrb[0].mxu0
    %v726 = vpop.f32.mrb[0].mxu0
    %v727 = vadd.f32 0.0, %v726
    %v728 = vpop.f32.mrb[0].mxu0
    %729 = vmatprep.mubr.bf16.mxu0 0
    %730 = vmatmul.mubr.bf16.gmra.mrb[0].mxu0 %v410
    %v731 = vpop.f32.mrb[0].mxu0
    %v732 = vadd.f32 0.0, %v731
    %v733 = vpop.f32.mrb[0].mxu0
    %v734 = vpop.f32.mrb[0].mxu0
    %v735 = vadd.f32 0.0, %v734
    %v736 = vpop.f32.mrb[0].mxu0
    %737 = vmatprep.mubr.bf16.mxu0 0
    %738 = vmatmul.mubr.bf16.gmra.mrb[0].mxu0 %v411
    %v739 = vpop.f32.mrb[0].mxu0
    %v740 = vadd.f32 0.0, %v739
    %v741 = vpop.f32.mrb[0].mxu0
    %v742 = vpop.f32.mrb[0].mxu0
    %v743 = vadd.f32 0.0, %v742
    %v744 = vpop.f32.mrb[0].mxu0
    %745 = vmatprep.mubr.bf16.mxu0 0
    %746 = vmatmul.mubr.bf16.gmra.mrb[0].mxu0 %v412
    %v747 = vpop.f32.mrb[0].mxu0
    %v748 = vadd.f32 0.0, %v747
    %v749 = vpop.f32.mrb[0].mxu0
    %v750 = vpop.f32.mrb[0].mxu0
    %v751 = vadd.f32 0.0, %v750
    %v752 = vpop.f32.mrb[0].mxu0
    %753 = vmatprep.mubr.bf16.mxu0 0
    %754 = vmatmul.mubr.bf16.gmra.mrb[0].mxu0 %v413
    %v755 = vpop.f32.mrb[0].mxu0
    %v756 = vadd.f32 0.0, %v755
    %v757 = vpop.f32.mrb[0].mxu0
    %v758 = vpop.f32.mrb[0].mxu0
    %v759 = vadd.f32 0.0, %v758
    %v760 = vpop.f32.mrb[0].mxu0
    %761 = vmatprep.mubr.bf16.mxu0 0
    %762 = vmatmul.mubr.bf16.gmra.mrb[0].mxu0 %v414
    %v763 = vpop.f32.mrb[0].mxu0
    %v764 = vadd.f32 0.0, %v763
    %v765 = vpop.f32.mrb[0].mxu0
    %v766 = vpop.f32.mrb[0].mxu0
    %v767 = vadd.f32 0.0, %v766
    %v768 = vpop.f32.mrb[0].mxu0
    %769 = vmatprep.mubr.bf16.mxu0 0
    %770 = vmatmul.mubr.bf16.gmra.mrb[0].mxu0 %v415
    %v771 = vpop.f32.mrb[0].mxu0
    %v772 = vadd.f32 0.0, %v771
    %v773 = vpop.f32.mrb[0].mxu0
    %v774 = vpop.f32.mrb[0].mxu0
    %v775 = vadd.f32 0.0, %v774
    %v776 = vpop.f32.mrb[0].mxu0
    %777 = vmatprep.mubr.bf16.mxu0 0
    %778 = vmatmul.mubr.bf16.gmra.mrb[0].mxu0 %v416
    %v779 = vpop.f32.mrb[0].mxu0
    %v780 = vadd.f32 0.0, %v779
    %v781 = vpop.f32.mrb[0].mxu0
    %v782 = vpop.f32.mrb[0].mxu0
    %v783 = vadd.f32 0.0, %v782
    %v784 = vpop.f32.mrb[0].mxu0
    %785 = vdwg.mxu0
    %v786 = vadd.f32 %v113, %v532
    %v787 = vadd.f32 %v114, %v535
    %v788 = vadd.f32 %v115, %v540
    %v789 = vadd.f32 %v116, %v543
    %v790 = vadd.f32 %v117, %v548
    %v791 = vadd.f32 %v118, %v551
    %v792 = vadd.f32 %v119, %v556
    %v793 = vadd.f32 %v120, %v559
    %v794 = vadd.f32 %v121, %v564
    %v795 = vadd.f32 %v122, %v567
    %v796 = vadd.f32 %v123, %v572
    %v797 = vadd.f32 %v124, %v575
    %v798 = vadd.f32 %v125, %v580
    %v799 = vadd.f32 %v126, %v583
    %v800 = vadd.f32 %v127, %v588
    %v801 = vadd.f32 %v128, %v591
    %v802 = vadd.f32 %v129, %v596
    %v803 = vadd.f32 %v130, %v599
    %v804 = vadd.f32 %v131, %v604
    %v805 = vadd.f32 %v132, %v607
    %v806 = vadd.f32 %v133, %v612
    %v807 = vadd.f32 %v134, %v615
    %v808 = vadd.f32 %v135, %v620
    %v809 = vadd.f32 %v136, %v623
    %v810 = vadd.f32 %v137, %v628
    %v811 = vadd.f32 %v138, %v631
    %v812 = vadd.f32 %v139, %v636
    %v813 = vadd.f32 %v140, %v639
    %v814 = vadd.f32 %v141, %v644
    %v815 = vadd.f32 %v142, %v647
    %v816 = vadd.f32 %v143, %v652
    %v817 = vadd.f32 %v144, %v655
    %v818 = vadd.f32 %v145, %v660
    %v819 = vadd.f32 %v146, %v663
    %v820 = vadd.f32 %v147, %v668
    %v821 = vadd.f32 %v148, %v671
    %v822 = vadd.f32 %v149, %v676
    %v823 = vadd.f32 %v150, %v679
    %v824 = vadd.f32 %v151, %v684
    %v825 = vadd.f32 %v152, %v687
    %v826 = vadd.f32 %v153, %v692
    %v827 = vadd.f32 %v154, %v695
    %v828 = vadd.f32 %v155, %v700
    %v829 = vadd.f32 %v156, %v703
    %v830 = vadd.f32 %v157, %v708
    %v831 = vadd.f32 %v158, %v711
    %v832 = vadd.f32 %v159, %v716
    %v833 = vadd.f32 %v160, %v719
    %v834 = vadd.f32 %v161, %v724
    %v835 = vadd.f32 %v162, %v727
    %v836 = vadd.f32 %v163, %v732
    %v837 = vadd.f32 %v164, %v735
    %v838 = vadd.f32 %v165, %v740
    %v839 = vadd.f32 %v166, %v743
    %v840 = vadd.f32 %v167, %v748
    %v841 = vadd.f32 %v168, %v751
    %v842 = vadd.f32 %v169, %v756
    %v843 = vadd.f32 %v170, %v759
    %v844 = vadd.f32 %v171, %v764
    %v845 = vadd.f32 %v172, %v767
    %v846 = vadd.f32 %v173, %v772
    %v847 = vadd.f32 %v174, %v775
    %v848 = vadd.f32 %v175, %v780
    %v849 = vadd.f32 %v176, %v783
    %850 = vst [vmem:[#allocation2] sm:$0xff] %v786
    %851 = vst [vmem:[#allocation2 + $0x8] sm:$0xff] %v787
    %852 = vst [vmem:[#allocation2 + $0x10] sm:$0xff] %v788
    %853 = vst [vmem:[#allocation2 + $0x18] sm:$0xff] %v789
    %854 = vst [vmem:[#allocation2 + $0x20] sm:$0xff] %v790
    %855 = vst [vmem:[#allocation2 + $0x28] sm:$0xff] %v791
    %856 = vst [vmem:[#allocation2 + $0x30] sm:$0xff] %v792
    %857 = vst [vmem:[#allocation2 + $0x38] sm:$0xff] %v793
    %858 = vst [vmem:[#allocation2 + $0x40] sm:$0xff] %v794
    %859 = vst [vmem:[#allocation2 + $0x48] sm:$0xff] %v795
    %860 = vst [vmem:[#allocation2 + $0x50] sm:$0xff] %v796
    %861 = vst [vmem:[#allocation2 + $0x58] sm:$0xff] %v797
    %862 = vst [vmem:[#allocation2 + $0x60] sm:$0xff] %v798
    %863 = vst [vmem:[#allocation2 + $0x68] sm:$0xff] %v799
    %864 = vst [vmem:[#allocation2 + $0x70] sm:$0xff] %v800
    %865 = vst [vmem:[#allocation2 + $0x78] sm:$0xff] %v801
    %866 = vst [vmem:[#allocation2 + $0x80] sm:$0xff] %v802
    %867 = vst [vmem:[#allocation2 + $0x88] sm:$0xff] %v803
    %868 = vst [vmem:[#allocation2 + $0x90] sm:$0xff] %v804
    %869 = vst [vmem:[#allocation2 + $0x98] sm:$0xff] %v805
    %870 = vst [vmem:[#allocation2 + $0xa0] sm:$0xff] %v806
    %871 = vst [vmem:[#allocation2 + $0xa8] sm:$0xff] %v807
    %872 = vst [vmem:[#allocation2 + $0xb0] sm:$0xff] %v808
    %873 = vst [vmem:[#allocation2 + $0xb8] sm:$0xff] %v809
    %874 = vst [vmem:[#allocation2 + $0xc0] sm:$0xff] %v810
    %875 = vst [vmem:[#allocation2 + $0xc8] sm:$0xff] %v811
    %876 = vst [vmem:[#allocation2 + $0xd0] sm:$0xff] %v812
    %877 = vst [vmem:[#allocation2 + $0xd8] sm:$0xff] %v813
    %878 = vst [vmem:[#allocation2 + $0xe0] sm:$0xff] %v814
    %879 = vst [vmem:[#allocation2 + $0xe8] sm:$0xff] %v815
    %880 = vst [vmem:[#allocation2 + $0xf0] sm:$0xff] %v816
    %881 = vst [vmem:[#allocation2 + $0xf8] sm:$0xff] %v817
    %882 = vst [vmem:[#allocation2 + $0x100] sm:$0xff] %v818
    %883 = vst [vmem:[#allocation2 + $0x108] sm:$0xff] %v819
    %884 = vst [vmem:[#allocation2 + $0x110] sm:$0xff] %v820
    %885 = vst [vmem:[#allocation2 + $0x118] sm:$0xff] %v821
    %886 = vst [vmem:[#allocation2 + $0x120] sm:$0xff] %v822
    %887 = vst [vmem:[#allocation2 + $0x128] sm:$0xff] %v823
    %888 = vst [vmem:[#allocation2 + $0x130] sm:$0xff] %v824
    %889 = vst [vmem:[#allocation2 + $0x138] sm:$0xff] %v825
    %890 = vst [vmem:[#allocation2 + $0x140] sm:$0xff] %v826
    %891 = vst [vmem:[#allocation2 + $0x148] sm:$0xff] %v827
    %892 = vst [vmem:[#allocation2 + $0x150] sm:$0xff] %v828
    %893 = vst [vmem:[#allocation2 + $0x158] sm:$0xff] %v829
    %894 = vst [vmem:[#allocation2 + $0x160] sm:$0xff] %v830
    %895 = vst [vmem:[#allocation2 + $0x168] sm:$0xff] %v831
    %896 = vst [vmem:[#allocation2 + $0x170] sm:$0xff] %v832
    %897 = vst [vmem:[#allocation2 + $0x178] sm:$0xff] %v833
    %898 = vst [vmem:[#allocation2 + $0x180] sm:$0xff] %v834
    %899 = vst [vmem:[#allocation2 + $0x188] sm:$0xff] %v835
    %900 = vst [vmem:[#allocation2 + $0x190] sm:$0xff] %v836
    %901 = vst [vmem:[#allocation2 + $0x198] sm:$0xff] %v837
    %902 = vst [vmem:[#allocation2 + $0x1a0] sm:$0xff] %v838
    %903 = vst [vmem:[#allocation2 + $0x1a8] sm:$0xff] %v839
    %904 = vst [vmem:[#allocation2 + $0x1b0] sm:$0xff] %v840
    %905 = vst [vmem:[#allocation2 + $0x1b8] sm:$0xff] %v841
    %906 = vst [vmem:[#allocation2 + $0x1c0] sm:$0xff] %v842
    %907 = vst [vmem:[#allocation2 + $0x1c8] sm:$0xff] %v843
    %908 = vst [vmem:[#allocation2 + $0x1d0] sm:$0xff] %v844
    %909 = vst [vmem:[#allocation2 + $0x1d8] sm:$0xff] %v845
    %910 = vst [vmem:[#allocation2 + $0x1e0] sm:$0xff] %v846
    %911 = vst [vmem:[#allocation2 + $0x1e8] sm:$0xff] %v847
    %912 = vst [vmem:[#allocation2 + $0x1f0] sm:$0xff] %v848
    %913 = vst [vmem:[#allocation2 + $0x1f8] sm:$0xff] %v849
    // Predicated region
    $region22: #{basic_block_std.4} parent=1 // pred_check
      %p914 = pneg %p45
    $region23: #{basic_block_std.4} parent=1 // pred_check_branch
      %916 = sbr.rel (%p914) target = $region25
    $region24: #{basic_block_std.4} parent=1 // pred_region
      %v917 = vld [vmem:[#allocation2] sm:$0xff]
      %v918 = vld [vmem:[#allocation2 + $0x8] sm:$0xff]
      %v919 = vld [vmem:[#allocation2 + $0x10] sm:$0xff]
      %v920 = vld [vmem:[#allocation2 + $0x18] sm:$0xff]
      %v921 = vld [vmem:[#allocation2 + $0x20] sm:$0xff]
      %v922 = vld [vmem:[#allocation2 + $0x28] sm:$0xff]
      %v923 = vld [vmem:[#allocation2 + $0x30] sm:$0xff]
      %v924 = vld [vmem:[#allocation2 + $0x38] sm:$0xff]
      %v925 = vld [vmem:[#allocation2 + $0x40] sm:$0xff]
      %v926 = vld [vmem:[#allocation2 + $0x48] sm:$0xff]
      %v927 = vld [vmem:[#allocation2 + $0x50] sm:$0xff]
      %v928 = vld [vmem:[#allocation2 + $0x58] sm:$0xff]
      %v929 = vld [vmem:[#allocation2 + $0x60] sm:$0xff]
      %v930 = vld [vmem:[#allocation2 + $0x68] sm:$0xff]
      %v931 = vld [vmem:[#allocation2 + $0x70] sm:$0xff]
      %v932 = vld [vmem:[#allocation2 + $0x78] sm:$0xff]
      %v933 = vld [vmem:[#allocation2 + $0x80] sm:$0xff]
      %v934 = vld [vmem:[#allocation2 + $0x88] sm:$0xff]
      %v935 = vld [vmem:[#allocation2 + $0x90] sm:$0xff]
      %v936 = vld [vmem:[#allocation2 + $0x98] sm:$0xff]
      %v937 = vld [vmem:[#allocation2 + $0xa0] sm:$0xff]
      %v938 = vld [vmem:[#allocation2 + $0xa8] sm:$0xff]
      %v939 = vld [vmem:[#allocation2 + $0xb0] sm:$0xff]
      %v940 = vld [vmem:[#allocation2 + $0xb8] sm:$0xff]
      %v941 = vld [vmem:[#allocation2 + $0xc0] sm:$0xff]
      %v942 = vld [vmem:[#allocation2 + $0xc8] sm:$0xff]
      %v943 = vld [vmem:[#allocation2 + $0xd0] sm:$0xff]
      %v944 = vld [vmem:[#allocation2 + $0xd8] sm:$0xff]
      %v945 = vld [vmem:[#allocation2 + $0xe0] sm:$0xff]
      %v946 = vld [vmem:[#allocation2 + $0xe8] sm:$0xff]
      %v947 = vld [vmem:[#allocation2 + $0xf0] sm:$0xff]
      %v948 = vld [vmem:[#allocation2 + $0xf8] sm:$0xff]
      %v949 = vld [vmem:[#allocation2 + $0x100] sm:$0xff]
      %v950 = vld [vmem:[#allocation2 + $0x108] sm:$0xff]
      %v951 = vld [vmem:[#allocation2 + $0x110] sm:$0xff]
      %v952 = vld [vmem:[#allocation2 + $0x118] sm:$0xff]
      %v953 = vld [vmem:[#allocation2 + $0x120] sm:$0xff]
      %v954 = vld [vmem:[#allocation2 + $0x128] sm:$0xff]
      %v955 = vld [vmem:[#allocation2 + $0x130] sm:$0xff]
      %v956 = vld [vmem:[#allocation2 + $0x138] sm:$0xff]
      %v957 = vld [vmem:[#allocation2 + $0x140] sm:$0xff]
      %v958 = vld [vmem:[#allocation2 + $0x148] sm:$0xff]
      %v959 = vld [vmem:[#allocation2 + $0x150] sm:$0xff]
      %v960 = vld [vmem:[#allocation2 + $0x158] sm:$0xff]
      %v961 = vld [vmem:[#allocation2 + $0x160] sm:$0xff]
      %v962 = vld [vmem:[#allocation2 + $0x168] sm:$0xff]
      %v963 = vld [vmem:[#allocation2 + $0x170] sm:$0xff]
      %v964 = vld [vmem:[#allocation2 + $0x178] sm:$0xff]
      %v965 = vld [vmem:[#allocation2 + $0x180] sm:$0xff]
      %v966 = vld [vmem:[#allocation2 + $0x188] sm:$0xff]
      %v967 = vld [vmem:[#allocation2 + $0x190] sm:$0xff]
      %v968 = vld [vmem:[#allocation2 + $0x198] sm:$0xff]
      %v969 = vld [vmem:[#allocation2 + $0x1a0] sm:$0xff]
      %v970 = vld [vmem:[#allocation2 + $0x1a8] sm:$0xff]
      %v971 = vld [vmem:[#allocation2 + $0x1b0] sm:$0xff]
      %v972 = vld [vmem:[#allocation2 + $0x1b8] sm:$0xff]
      %v973 = vld [vmem:[#allocation2 + $0x1c0] sm:$0xff]
      %v974 = vld [vmem:[#allocation2 + $0x1c8] sm:$0xff]
      %v975 = vld [vmem:[#allocation2 + $0x1d0] sm:$0xff]
      %v976 = vld [vmem:[#allocation2 + $0x1d8] sm:$0xff]
      %v977 = vld [vmem:[#allocation2 + $0x1e0] sm:$0xff]
      %v978 = vld [vmem:[#allocation2 + $0x1e8] sm:$0xff]
      %v979 = vld [vmem:[#allocation2 + $0x1f0] sm:$0xff]
      %v980 = vld [vmem:[#allocation2 + $0x1f8] sm:$0xff]
      %981 = vst [vmem:[#allocation8] sm:$0xff] %v917
      %982 = vst [vmem:[#allocation8 + $0x8] sm:$0xff] %v918
      %983 = vst [vmem:[#allocation8 + $0x10] sm:$0xff] %v919
      %984 = vst [vmem:[#allocation8 + $0x18] sm:$0xff] %v920
      %985 = vst [vmem:[#allocation8 + $0x20] sm:$0xff] %v921
      %986 = vst [vmem:[#allocation8 + $0x28] sm:$0xff] %v922
      %987 = vst [vmem:[#allocation8 + $0x30] sm:$0xff] %v923
      %988 = vst [vmem:[#allocation8 + $0x38] sm:$0xff] %v924
      %989 = vst [vmem:[#allocation8 + $0x40] sm:$0xff] %v925
      %990 = vst [vmem:[#allocation8 + $0x48] sm:$0xff] %v926
      %991 = vst [vmem:[#allocation8 + $0x50] sm:$0xff] %v927
      %992 = vst [vmem:[#allocation8 + $0x58] sm:$0xff] %v928
      %993 = vst [vmem:[#allocation8 + $0x60] sm:$0xff] %v929
      %994 = vst [vmem:[#allocation8 + $0x68] sm:$0xff] %v930
      %995 = vst [vmem:[#allocation8 + $0x70] sm:$0xff] %v931
      %996 = vst [vmem:[#allocation8 + $0x78] sm:$0xff] %v932
      %997 = vst [vmem:[#allocation8 + $0x80] sm:$0xff] %v933
      %998 = vst [vmem:[#allocation8 + $0x88] sm:$0xff] %v934
      %999 = vst [vmem:[#allocation8 + $0x90] sm:$0xff] %v935
      %1000 = vst [vmem:[#allocation8 + $0x98] sm:$0xff] %v936
      %1001 = vst [vmem:[#allocation8 + $0xa0] sm:$0xff] %v937
      %1002 = vst [vmem:[#allocation8 + $0xa8] sm:$0xff] %v938
      %1003 = vst [vmem:[#allocation8 + $0xb0] sm:$0xff] %v939
      %1004 = vst [vmem:[#allocation8 + $0xb8] sm:$0xff] %v940
      %1005 = vst [vmem:[#allocation8 + $0xc0] sm:$0xff] %v941
      %1006 = vst [vmem:[#allocation8 + $0xc8] sm:$0xff] %v942
      %1007 = vst [vmem:[#allocation8 + $0xd0] sm:$0xff] %v943
      %1008 = vst [vmem:[#allocation8 + $0xd8] sm:$0xff] %v944
      %1009 = vst [vmem:[#allocation8 + $0xe0] sm:$0xff] %v945
      %1010 = vst [vmem:[#allocation8 + $0xe8] sm:$0xff] %v946
      %1011 = vst [vmem:[#allocation8 + $0xf0] sm:$0xff] %v947
      %1012 = vst [vmem:[#allocation8 + $0xf8] sm:$0xff] %v948
      %1013 = vst [vmem:[#allocation8 + $0x100] sm:$0xff] %v949
      %1014 = vst [vmem:[#allocation8 + $0x108] sm:$0xff] %v950
      %1015 = vst [vmem:[#allocation8 + $0x110] sm:$0xff] %v951
      %1016 = vst [vmem:[#allocation8 + $0x118] sm:$0xff] %v952
      %1017 = vst [vmem:[#allocation8 + $0x120] sm:$0xff] %v953
      %1018 = vst [vmem:[#allocation8 + $0x128] sm:$0xff] %v954
      %1019 = vst [vmem:[#allocation8 + $0x130] sm:$0xff] %v955
      %1020 = vst [vmem:[#allocation8 + $0x138] sm:$0xff] %v956
      %1021 = vst [vmem:[#allocation8 + $0x140] sm:$0xff] %v957
      %1022 = vst [vmem:[#allocation8 + $0x148] sm:$0xff] %v958
      %1023 = vst [vmem:[#allocation8 + $0x150] sm:$0xff] %v959
      %1024 = vst [vmem:[#allocation8 + $0x158] sm:$0xff] %v960
      %1025 = vst [vmem:[#allocation8 + $0x160] sm:$0xff] %v961
      %1026 = vst [vmem:[#allocation8 + $0x168] sm:$0xff] %v962
      %1027 = vst [vmem:[#allocation8 + $0x170] sm:$0xff] %v963
      %1028 = vst [vmem:[#allocation8 + $0x178] sm:$0xff] %v964
      %1029 = vst [vmem:[#allocation8 + $0x180] sm:$0xff] %v965
      %1030 = vst [vmem:[#allocation8 + $0x188] sm:$0xff] %v966
      %1031 = vst [vmem:[#allocation8 + $0x190] sm:$0xff] %v967
      %1032 = vst [vmem:[#allocation8 + $0x198] sm:$0xff] %v968
      %1033 = vst [vmem:[#allocation8 + $0x1a0] sm:$0xff] %v969
      %1034 = vst [vmem:[#allocation8 + $0x1a8] sm:$0xff] %v970
      %1035 = vst [vmem:[#allocation8 + $0x1b0] sm:$0xff] %v971
      %1036 = vst [vmem:[#allocation8 + $0x1b8] sm:$0xff] %v972
      %1037 = vst [vmem:[#allocation8 + $0x1c0] sm:$0xff] %v973
      %1038 = vst [vmem:[#allocation8 + $0x1c8] sm:$0xff] %v974
      %1039 = vst [vmem:[#allocation8 + $0x1d0] sm:$0xff] %v975
      %1040 = vst [vmem:[#allocation8 + $0x1d8] sm:$0xff] %v976
      %1041 = vst [vmem:[#allocation8 + $0x1e0] sm:$0xff] %v977
      %1042 = vst [vmem:[#allocation8 + $0x1e8] sm:$0xff] %v978
      %1043 = vst [vmem:[#allocation8 + $0x1f0] sm:$0xff] %v979
      %1044 = vst [vmem:[#allocation8 + $0x1f8] sm:$0xff] %v980
      %v1045 = vadd.f32 %v917, %v918
      %v1046 = vadd.f32 %v1045, %v919
      %v1047 = vadd.f32 %v1046, %v920
      %v1048 = vadd.f32 %v1047, %v921
      %v1049 = vadd.f32 %v1048, %v922
      %v1050 = vadd.f32 %v1049, %v923
      %v1051 = vadd.f32 %v1050, %v924
      %v1052 = vadd.f32 %v1051, %v925
      %v1053 = vadd.f32 %v1052, %v926
      %v1054 = vadd.f32 %v1053, %v927
      %v1055 = vadd.f32 %v1054, %v928
      %v1056 = vadd.f32 %v1055, %v929
      %v1057 = vadd.f32 %v1056, %v930
      %v1058 = vadd.f32 %v1057, %v931
      %v1059 = vadd.f32 %v1058, %v932
      %v1060 = vadd.f32 %v1059, %v933
      %v1061 = vadd.f32 %v1060, %v934
      %v1062 = vadd.f32 %v1061, %v935
      %v1063 = vadd.f32 %v1062, %v936
      %v1064 = vadd.f32 %v1063, %v937
      %v1065 = vadd.f32 %v1064, %v938
      %v1066 = vadd.f32 %v1065, %v939
      %v1067 = vadd.f32 %v1066, %v940
      %v1068 = vadd.f32 %v1067, %v941
      %v1069 = vadd.f32 %v1068, %v942
      %v1070 = vadd.f32 %v1069, %v943
      %v1071 = vadd.f32 %v1070, %v944
      %v1072 = vadd.f32 %v1071, %v945
      %v1073 = vadd.f32 %v1072, %v946
      %v1074 = vadd.f32 %v1073, %v947
      %v1075 = vadd.f32 %v1074, %v948
      %v1076 = vadd.f32 %v1075, %v949
      %v1077 = vadd.f32 %v1076, %v950
      %v1078 = vadd.f32 %v1077, %v951
      %v1079 = vadd.f32 %v1078, %v952
      %v1080 = vadd.f32 %v1079, %v953
      %v1081 = vadd.f32 %v1080, %v954
      %v1082 = vadd.f32 %v1081, %v955
      %v1083 = vadd.f32 %v1082, %v956
      %v1084 = vadd.f32 %v1083, %v957
      %v1085 = vadd.f32 %v1084, %v958
      %v1086 = vadd.f32 %v1085, %v959
      %v1087 = vadd.f32 %v1086, %v960
      %v1088 = vadd.f32 %v1087, %v961
      %v1089 = vadd.f32 %v1088, %v962
      %v1090 = vadd.f32 %v1089, %v963
      %v1091 = vadd.f32 %v1090, %v964
      %v1092 = vadd.f32 %v1091, %v965
      %v1093 = vadd.f32 %v1092, %v966
      %v1094 = vadd.f32 %v1093, %v967
      %v1095 = vadd.f32 %v1094, %v968
      %v1096 = vadd.f32 %v1095, %v969
      %v1097 = vadd.f32 %v1096, %v970
      %v1098 = vadd.f32 %v1097, %v971
      %v1099 = vadd.f32 %v1098, %v972
      %v1100 = vadd.f32 %v1099, %v973
      %v1101 = vadd.f32 %v1100, %v974
      %v1102 = vadd.f32 %v1101, %v975
      %v1103 = vadd.f32 %v1102, %v976
      %v1104 = vadd.f32 %v1103, %v977
      %v1105 = vadd.f32 %v1104, %v978
      %v1106 = vadd.f32 %v1105, %v979
      %v1107 = vadd.f32 %v1106, %v980
      %v1108 = vrot.slane %v1107, 4
      %v1109 = vadd.f32 %v1107, %v1108
      %v1110 = vrot.slane %v1109, 2
      %v1111 = vadd.f32 %v1109, %v1110
      %v1112 = vrot.slane %v1111, 1
      %v1113 = vadd.f32 %v1111, %v1112
      %v1114 = vmul.f32 %v917, %v917
      %v1115 = vmul.f32 %v918, %v918
      %v1116 = vmul.f32 %v919, %v919
      %v1117 = vmul.f32 %v920, %v920
      %v1118 = vmul.f32 %v921, %v921
      %v1119 = vmul.f32 %v922, %v922
      %v1120 = vmul.f32 %v923, %v923
      %v1121 = vmul.f32 %v924, %v924
      %v1122 = vmul.f32 %v925, %v925
      %v1123 = vmul.f32 %v926, %v926
      %v1124 = vmul.f32 %v927, %v927
      %v1125 = vmul.f32 %v928, %v928
      %v1126 = vmul.f32 %v929, %v929
      %v1127 = vmul.f32 %v930, %v930
      %v1128 = vmul.f32 %v931, %v931
      %v1129 = vmul.f32 %v932, %v932
      %v1130 = vmul.f32 %v933, %v933
      %v1131 = vmul.f32 %v934, %v934
      %v1132 = vmul.f32 %v935, %v935
      %v1133 = vmul.f32 %v936, %v936
      %v1134 = vmul.f32 %v937, %v937
      %v1135 = vmul.f32 %v938, %v938
      %v1136 = vmul.f32 %v939, %v939
      %v1137 = vmul.f32 %v940, %v940
      %v1138 = vmul.f32 %v941, %v941
      %v1139 = vmul.f32 %v942, %v942
      %v1140 = vmul.f32 %v943, %v943
      %v1141 = vmul.f32 %v944, %v944
      %v1142 = vmul.f32 %v945, %v945
      %v1143 = vmul.f32 %v946, %v946
      %v1144 = vmul.f32 %v947, %v947
      %v1145 = vmul.f32 %v948, %v948
      %v1146 = vmul.f32 %v949, %v949
      %v1147 = vmul.f32 %v950, %v950
      %v1148 = vmul.f32 %v951, %v951
      %v1149 = vmul.f32 %v952, %v952
      %v1150 = vmul.f32 %v953, %v953
      %v1151 = vmul.f32 %v954, %v954
      %v1152 = vmul.f32 %v955, %v955
      %v1153 = vmul.f32 %v956, %v956
      %v1154 = vmul.f32 %v957, %v957
      %v1155 = vmul.f32 %v958, %v958
      %v1156 = vmul.f32 %v959, %v959
      %v1157 = vmul.f32 %v960, %v960
      %v1158 = vmul.f32 %v961, %v961
      %v1159 = vmul.f32 %v962, %v962
      %v1160 = vmul.f32 %v963, %v963
      %v1161 = vmul.f32 %v964, %v964
      %v1162 = vmul.f32 %v965, %v965
      %v1163 = vmul.f32 %v966, %v966
      %v1164 = vmul.f32 %v967, %v967
      %v1165 = vmul.f32 %v968, %v968
      %v1166 = vmul.f32 %v969, %v969
      %v1167 = vmul.f32 %v970, %v970
      %v1168 = vmul.f32 %v971, %v971
      %v1169 = vmul.f32 %v972, %v972
      %v1170 = vmul.f32 %v973, %v973
      %v1171 = vmul.f32 %v974, %v974
      %v1172 = vmul.f32 %v975, %v975
      %v1173 = vmul.f32 %v976, %v976
      %v1174 = vmul.f32 %v977, %v977
      %v1175 = vmul.f32 %v978, %v978
      %v1176 = vmul.f32 %v979, %v979
      %v1177 = vmul.f32 %v980, %v980
      %v1178 = vadd.f32 %v1114, %v1115
      %v1179 = vadd.f32 %v1178, %v1116
      %v1180 = vadd.f32 %v1179, %v1117
      %v1181 = vadd.f32 %v1180, %v1118
      %v1182 = vadd.f32 %v1181, %v1119
      %v1183 = vadd.f32 %v1182, %v1120
      %v1184 = vadd.f32 %v1183, %v1121
      %v1185 = vadd.f32 %v1184, %v1122
      %v1186 = vadd.f32 %v1185, %v1123
      %v1187 = vadd.f32 %v1186, %v1124
      %v1188 = vadd.f32 %v1187, %v1125
      %v1189 = vadd.f32 %v1188, %v1126
      %v1190 = vadd.f32 %v1189, %v1127
      %v1191 = vadd.f32 %v1190, %v1128
      %v1192 = vadd.f32 %v1191, %v1129
      %v1193 = vadd.f32 %v1192, %v1130
      %v1194 = vadd.f32 %v1193, %v1131
      %v1195 = vadd.f32 %v1194, %v1132
      %v1196 = vadd.f32 %v1195, %v1133
      %v1197 = vadd.f32 %v1196, %v1134
      %v1198 = vadd.f32 %v1197, %v1135
      %v1199 = vadd.f32 %v1198, %v1136
      %v1200 = vadd.f32 %v1199, %v1137
      %v1201 = vadd.f32 %v1200, %v1138
      %v1202 = vadd.f32 %v1201, %v1139
      %v1203 = vadd.f32 %v1202, %v1140
      %v1204 = vadd.f32 %v1203, %v1141
      %v1205 = vadd.f32 %v1204, %v1142
      %v1206 = vadd.f32 %v1205, %v1143
      %v1207 = vadd.f32 %v1206, %v1144
      %v1208 = vadd.f32 %v1207, %v1145
      %v1209 = vadd.f32 %v1208, %v1146
      %v1210 = vadd.f32 %v1209, %v1147
      %v1211 = vadd.f32 %v1210, %v1148
      %v1212 = vadd.f32 %v1211, %v1149
      %v1213 = vadd.f32 %v1212, %v1150
      %v1214 = vadd.f32 %v1213, %v1151
      %v1215 = vadd.f32 %v1214, %v1152
      %v1216 = vadd.f32 %v1215, %v1153
      %v1217 = vadd.f32 %v1216, %v1154
      %v1218 = vadd.f32 %v1217, %v1155
      %v1219 = vadd.f32 %v1218, %v1156
      %v1220 = vadd.f32 %v1219, %v1157
      %v1221 = vadd.f32 %v1220, %v1158
      %v1222 = vadd.f32 %v1221, %v1159
      %v1223 = vadd.f32 %v1222, %v1160
      %v1224 = vadd.f32 %v1223, %v1161
      %v1225 = vadd.f32 %v1224, %v1162
      %v1226 = vadd.f32 %v1225, %v1163
      %v1227 = vadd.f32 %v1226, %v1164
      %v1228 = vadd.f32 %v1227, %v1165
      %v1229 = vadd.f32 %v1228, %v1166
      %v1230 = vadd.f32 %v1229, %v1167
      %v1231 = vadd.f32 %v1230, %v1168
      %v1232 = vadd.f32 %v1231, %v1169
      %v1233 = vadd.f32 %v1232, %v1170
      %v1234 = vadd.f32 %v1233, %v1171
      %v1235 = vadd.f32 %v1234, %v1172
      %v1236 = vadd.f32 %v1235, %v1173
      %v1237 = vadd.f32 %v1236, %v1174
      %v1238 = vadd.f32 %v1237, %v1175
      %v1239 = vadd.f32 %v1238, %v1176
      %v1240 = vadd.f32 %v1239, %v1177
      %v1241 = vrot.slane %v1240, 4
      %v1242 = vadd.f32 %v1240, %v1241
      %v1243 = vrot.slane %v1242, 2
      %v1244 = vadd.f32 %v1242, %v1243
      %v1245 = vrot.slane %v1244, 1
      %v1246 = vadd.f32 %v1244, %v1245
      %1247 = vst [vmem:[#allocation9] sm:$0xff] %v1113
      %1248 = vst [vmem:[#allocation11] sm:$0xff] %v1246
    $region25: #{basic_block_std.4} parent=1 // pred_fallthru
      _
    // Predicated region
    $region26: #{basic_block_std.4} parent=1 // pred_check
      _
    $region27: #{basic_block_std.4} parent=1 // pred_check_branch
      %1250 = sbr.rel (0) target = $region29
    $region28: #{basic_block_std.4} parent=1 // pred_region
      %s1252 = ssub.s32 8192, 8192
      %1253 = vsyncadd [#allocation5], %s1252
      %s1254 = sshll.u32 [#allocation8], 4
      %s1255 = int_to_ptr.vmem [resolvable:$true] %s1254
      %1260 = dma.vmem_to_hbm [thread:$0]  %s1255, 8192, %s2, [#allocation5], 128, 128, 8
    $region29: #{basic_block_std.4} parent=1 // pred_fallthru
      _
    // Predicated region
    $region30: #{basic_block_std.4} parent=1 // pred_check
      _
    $region31: #{basic_block_std.4} parent=1 // pred_check_branch
      %1262 = sbr.rel (0) target = $region33
    $region32: #{basic_block_std.4} parent=1 // pred_region
      %s1264 = ssub.s32 128, 128
      %1265 = vsyncadd [#allocation10], %s1264
      %s1267 = sshll.u32 [#allocation9], 4
      %s1268 = int_to_ptr.vmem [resolvable:$true] %s1267
      %1270 = dma.vmem_to_hbm [thread:$0]  %s1268, 128, %s3, [#allocation10]
    $region33: #{basic_block_std.4} parent=1 // pred_fallthru
      _
    // Predicated region
    $region34: #{basic_block_std.4} parent=1 // pred_check
      _
    $region35: #{basic_block_std.4} parent=1 // pred_check_branch
      %1272 = sbr.rel (0) target = $region37
    $region36: #{basic_block_std.4} parent=1 // pred_region
      %s1274 = ssub.s32 128, 128
      %1275 = vsyncadd [#allocation10], %s1274
      %s1277 = sshll.u32 [#allocation11], 4
      %s1278 = int_to_ptr.vmem [resolvable:$true] %s1277
      %1280 = dma.vmem_to_hbm [thread:$0]  %s1278, 128, %s4, [#allocation10]
    $region37: #{basic_block_std.4} parent=1 // pred_fallthru
      _
    // Predicated region
    $region38: #{basic_block_std.4} parent=1 // pred_check
      _
    $region39: #{basic_block_std.4} parent=1 // pred_check_branch
      %1282 = sbr.rel (0) target = $region41
    $region40: #{basic_block_std.4} parent=1 // pred_region
      %1283 = dma.done [#allocation5], 8192
    $region41: #{basic_block_std.4} parent=1 // pred_fallthru
      _
    // Predicated region
    $region42: #{basic_block_std.4} parent=1 // pred_check
      _
    $region43: #{basic_block_std.4} parent=1 // pred_check_branch
      %1285 = sbr.rel (0) target = $region45
    $region44: #{basic_block_std.4} parent=1 // pred_region
      %1286 = dma.done [#allocation10], 128
    $region45: #{basic_block_std.4} parent=1 // pred_fallthru
      _
    // Predicated region
    $region46: #{basic_block_std.4} parent=1 // pred_check
      _
    $region47: #{basic_block_std.4} parent=1 // pred_check_branch
      %1288 = sbr.rel (0) target = $region49
    $region48: #{basic_block_std.4} parent=1 // pred_region
      %1289 = dma.done [#allocation10], 128
    $region49: #{basic_block_std.4} parent=1 // pred_fallthru
      _
    %1290 = vsyncpa [#allocation4], 1
    %1291 = vsyncpa [#allocation7], 1
    %1292 = vsyncpa [#allocation5], 1
    %1293 = vsyncpa [#allocation10], 1

// kernel: basic_block_std.7
$region0: #{basic_block_std.7}
  #allocation0 [shape = 'u32[]', space=smem, size = 0x4, offset = 0x4, fixed_abs, tag = 'smem constant byte address 0x4 - core index']
  #allocation1 [shape = 'u32[144,128]{1,0:T(1,128)}', space=vmem, size = 0x12000, scoped, tag = 'internal scratch']
  %s0 = inlined_call_operand.hbm [shape: f32[512,128], index: 0, kind: input, shape index: {}]
  %s1 = inlined_call_operand.hbm [shape: f32[1,128], index: 1, kind: input, shape index: {}]
  %s2 = inlined_call_operand.hbm [shape: f32[1,128], index: 2, kind: input, shape index: {}]
  %s3 = inlined_call_operand.hbm [shape: f32[512,128], index: 3, kind: input, shape index: {}]
  %s4 = inlined_call_operand.hbm [shape: f32[1,128], index: 4, kind: input, shape index: {}]
  %s5 = inlined_call_operand.hbm [shape: f32[1,128], index: 5, kind: input, shape index: {}]
  %s6 = inlined_call_operand.hbm [shape: f32[512,128], index: 6, kind: output, shape index: {}]
  %s7 = sld [smem:[#allocation0]]
  $region58: #{basic_block_std.7} parent=0
    _
  %s9 = ssub.s32 1, %s7
  %s10 = scalar_select 0, %s9, %s7
  $region1: #{basic_block_std.7} parent=0
    #allocation2 [shape = 'u8[262144]{0}', space=vmem, size = 0x40000, scoped, tag = 'input window, operand 0, single buffered']
    #allocation3 [shape = 's32[1]{0}', space=sflag, size = 0x4, scoped, tag = 'scoped memory for basic_block_std.7']
    #allocation4 [shape = 's32[1]{0}', space=sflag, size = 0x4, scoped, tag = 'scoped memory for basic_block_std.7']
    #allocation5 [shape = 'u8[512]{0}', space=vmem, size = 0x400, scoped, tag = 'input window, operand 1, single buffered']
    #allocation6 [shape = 's32[1]{0}', space=sflag, size = 0x4, scoped, tag = 'scoped memory for basic_block_std.7']
    #allocation7 [shape = 'u8[512]{0}', space=vmem, size = 0x400, scoped, tag = 'input window, operand 2, single buffered']
    #allocation8 [shape = 'u8[262144]{0}', space=vmem, size = 0x40000, scoped, tag = 'input window, operand 3, single buffered']
    #allocation9 [shape = 's32[1]{0}', space=sflag, size = 0x4, scoped, tag = 'scoped memory for basic_block_std.7']
    #allocation10 [shape = 'u8[512]{0}', space=vmem, size = 0x400, scoped, tag = 'input window, operand 4, single buffered']
    #allocation11 [shape = 'u8[512]{0}', space=vmem, size = 0x400, scoped, tag = 'input window, operand 5, single buffered']
    #allocation12 [shape = 's32[1]{0}', space=sflag, size = 0x4, scoped, tag = 'scoped memory for basic_block_std.7']
    #allocation13 [shape = 'u8[262144]{0}', space=vmem, size = 0x40000, scoped, tag = 'output window, operand 0, single buffered']
    %11 = vsyncpa [#allocation3], 0
    %12 = vsyncpa [#allocation6], 0
    %13 = vsyncpa [#allocation9], 0
    %14 = vsyncpa [#allocation12], 0
    %15 = vsyncpa [#allocation4], 0
    // Predicated region
    $region2: #{basic_block_std.7} parent=1 // pred_check
      _
    $region3: #{basic_block_std.7} parent=1 // pred_check_branch
      %17 = sbr.rel (0) target = $region5
    $region4: #{basic_block_std.7} parent=1 // pred_region
      %s19 = ssub.s32 8192, 8192
      %20 = vsyncadd [#allocation3], %s19
      %s21 = sshll.u32 [#allocation2], 4
      %s22 = int_to_ptr.vmem [resolvable:$true] %s21
      %27 = dma.hbm_to_vmem [thread:$0]  %s0, 8192, %s22, [#allocation3], 128, 128, 8
    $region5: #{basic_block_std.7} parent=1 // pred_fallthru
      _
    // Predicated region
    $region6: #{basic_block_std.7} parent=1 // pred_check
      _
    $region7: #{basic_block_std.7} parent=1 // pred_check_branch
      %29 = sbr.rel (0) target = $region9
    $region8: #{basic_block_std.7} parent=1 // pred_region
      %s31 = ssub.s32 16, 16
      %32 = vsyncadd [#allocation6], %s31
      %s34 = sshll.u32 [#allocation5], 4
      %s35 = int_to_ptr.vmem [resolvable:$true] %s34
      %37 = dma.hbm_to_vmem [thread:$0]  %s1, 16, %s35, [#allocation6]
    $region9: #{basic_block_std.7} parent=1 // pred_fallthru
      _
    // Predicated region
    $region10: #{basic_block_std.7} parent=1 // pred_check
      _
    $region11: #{basic_block_std.7} parent=1 // pred_check_branch
      %39 = sbr.rel (0) target = $region13
    $region12: #{basic_block_std.7} parent=1 // pred_region
      %s41 = ssub.s32 16, 16
      %42 = vsyncadd [#allocation6], %s41
      %s44 = sshll.u32 [#allocation7], 4
      %s45 = int_to_ptr.vmem [resolvable:$true] %s44
      %47 = dma.hbm_to_vmem [thread:$0]  %s2, 16, %s45, [#allocation6]
    $region13: #{basic_block_std.7} parent=1 // pred_fallthru
      _
    // Predicated region
    $region14: #{basic_block_std.7} parent=1 // pred_check
      _
    $region15: #{basic_block_std.7} parent=1 // pred_check_branch
      %49 = sbr.rel (0) target = $region17
    $region16: #{basic_block_std.7} parent=1 // pred_region
      %s51 = ssub.s32 8192, 8192
      %52 = vsyncadd [#allocation9], %s51
      %s53 = sshll.u32 [#allocation8], 4
      %s54 = int_to_ptr.vmem [resolvable:$true] %s53
      %59 = dma.hbm_to_vmem [thread:$0]  %s3, 8192, %s54, [#allocation9], 128, 128, 8
    $region17: #{basic_block_std.7} parent=1 // pred_fallthru
      _
    // Predicated region
    $region18: #{basic_block_std.7} parent=1 // pred_check
      _
    $region19: #{basic_block_std.7} parent=1 // pred_check_branch
      %61 = sbr.rel (0) target = $region21
    $region20: #{basic_block_std.7} parent=1 // pred_region
      %s63 = ssub.s32 16, 16
      %64 = vsyncadd [#allocation9], %s63
      %s66 = sshll.u32 [#allocation10], 4
      %s67 = int_to_ptr.vmem [resolvable:$true] %s66
      %69 = dma.hbm_to_vmem [thread:$0]  %s4, 16, %s67, [#allocation9]
    $region21: #{basic_block_std.7} parent=1 // pred_fallthru
      _
    // Predicated region
    $region22: #{basic_block_std.7} parent=1 // pred_check
      _
    $region23: #{basic_block_std.7} parent=1 // pred_check_branch
      %71 = sbr.rel (0) target = $region25
    $region24: #{basic_block_std.7} parent=1 // pred_region
      %s73 = ssub.s32 16, 16
      %74 = vsyncadd [#allocation12], %s73
      %s76 = sshll.u32 [#allocation11], 4
      %s77 = int_to_ptr.vmem [resolvable:$true] %s76
      %79 = dma.hbm_to_vmem [thread:$0]  %s5, 16, %s77, [#allocation12]
    $region25: #{basic_block_std.7} parent=1 // pred_fallthru
      _
    // Predicated region
    $region26: #{basic_block_std.7} parent=1 // pred_check
      _
    $region27: #{basic_block_std.7} parent=1 // pred_check_branch
      %81 = sbr.rel (0) target = $region29
    $region28: #{basic_block_std.7} parent=1 // pred_region
      %82 = dma.done [#allocation3], 8192
    $region29: #{basic_block_std.7} parent=1 // pred_fallthru
      _
    // Predicated region
    $region30: #{basic_block_std.7} parent=1 // pred_check
      _
    $region31: #{basic_block_std.7} parent=1 // pred_check_branch
      %84 = sbr.rel (0) target = $region33
    $region32: #{basic_block_std.7} parent=1 // pred_region
      %85 = dma.done [#allocation6], 16
    $region33: #{basic_block_std.7} parent=1 // pred_fallthru
      _
    // Predicated region
    $region34: #{basic_block_std.7} parent=1 // pred_check
      _
    $region35: #{basic_block_std.7} parent=1 // pred_check_branch
      %87 = sbr.rel (0) target = $region37
    $region36: #{basic_block_std.7} parent=1 // pred_region
      %88 = dma.done [#allocation6], 16
    $region37: #{basic_block_std.7} parent=1 // pred_fallthru
      _
    // Predicated region
    $region38: #{basic_block_std.7} parent=1 // pred_check
      _
    $region39: #{basic_block_std.7} parent=1 // pred_check_branch
      %90 = sbr.rel (0) target = $region41
    $region40: #{basic_block_std.7} parent=1 // pred_region
      %91 = dma.done [#allocation9], 8192
    $region41: #{basic_block_std.7} parent=1 // pred_fallthru
      _
    // Predicated region
    $region42: #{basic_block_std.7} parent=1 // pred_check
      _
    $region43: #{basic_block_std.7} parent=1 // pred_check_branch
      %93 = sbr.rel (0) target = $region45
    $region44: #{basic_block_std.7} parent=1 // pred_region
      %94 = dma.done [#allocation9], 16
    $region45: #{basic_block_std.7} parent=1 // pred_fallthru
      _
    // Predicated region
    $region46: #{basic_block_std.7} parent=1 // pred_check
      _
    $region47: #{basic_block_std.7} parent=1 // pred_check_branch
      %96 = sbr.rel (0) target = $region49
    $region48: #{basic_block_std.7} parent=1 // pred_region
      %97 = dma.done [#allocation12], 16
    $region49: #{basic_block_std.7} parent=1 // pred_fallthru
      _
    %v98 = vld [vmem:[#allocation2] sm:$0xff]
    %v99 = vld [vmem:[#allocation2 + $0x8] sm:$0xff]
    %v100 = vld [vmem:[#allocation2 + $0x10] sm:$0xff]
    %v101 = vld [vmem:[#allocation2 + $0x18] sm:$0xff]
    %v102 = vld [vmem:[#allocation2 + $0x20] sm:$0xff]
    %v103 = vld [vmem:[#allocation2 + $0x28] sm:$0xff]
    %v104 = vld [vmem:[#allocation2 + $0x30] sm:$0xff]
    %v105 = vld [vmem:[#allocation2 + $0x38] sm:$0xff]
    %v106 = vld [vmem:[#allocation2 + $0x40] sm:$0xff]
    %v107 = vld [vmem:[#allocation2 + $0x48] sm:$0xff]
    %v108 = vld [vmem:[#allocation2 + $0x50] sm:$0xff]
    %v109 = vld [vmem:[#allocation2 + $0x58] sm:$0xff]
    %v110 = vld [vmem:[#allocation2 + $0x60] sm:$0xff]
    %v111 = vld [vmem:[#allocation2 + $0x68] sm:$0xff]
    %v112 = vld [vmem:[#allocation2 + $0x70] sm:$0xff]
    %v113 = vld [vmem:[#allocation2 + $0x78] sm:$0xff]
    %v114 = vld [vmem:[#allocation2 + $0x80] sm:$0xff]
    %v115 = vld [vmem:[#allocation2 + $0x88] sm:$0xff]
    %v116 = vld [vmem:[#allocation2 + $0x90] sm:$0xff]
    %v117 = vld [vmem:[#allocation2 + $0x98] sm:$0xff]
    %v118 = vld [vmem:[#allocation2 + $0xa0] sm:$0xff]
    %v119 = vld [vmem:[#allocation2 + $0xa8] sm:$0xff]
    %v120 = vld [vmem:[#allocation2 + $0xb0] sm:$0xff]
    %v121 = vld [vmem:[#allocation2 + $0xb8] sm:$0xff]
    %v122 = vld [vmem:[#allocation2 + $0xc0] sm:$0xff]
    %v123 = vld [vmem:[#allocation2 + $0xc8] sm:$0xff]
    %v124 = vld [vmem:[#allocation2 + $0xd0] sm:$0xff]
    %v125 = vld [vmem:[#allocation2 + $0xd8] sm:$0xff]
    %v126 = vld [vmem:[#allocation2 + $0xe0] sm:$0xff]
    %v127 = vld [vmem:[#allocation2 + $0xe8] sm:$0xff]
    %v128 = vld [vmem:[#allocation2 + $0xf0] sm:$0xff]
    %v129 = vld [vmem:[#allocation2 + $0xf8] sm:$0xff]
    %v130 = vld [vmem:[#allocation2 + $0x100] sm:$0xff]
    %v131 = vld [vmem:[#allocation2 + $0x108] sm:$0xff]
    %v132 = vld [vmem:[#allocation2 + $0x110] sm:$0xff]
    %v133 = vld [vmem:[#allocation2 + $0x118] sm:$0xff]
    %v134 = vld [vmem:[#allocation2 + $0x120] sm:$0xff]
    %v135 = vld [vmem:[#allocation2 + $0x128] sm:$0xff]
    %v136 = vld [vmem:[#allocation2 + $0x130] sm:$0xff]
    %v137 = vld [vmem:[#allocation2 + $0x138] sm:$0xff]
    %v138 = vld [vmem:[#allocation2 + $0x140] sm:$0xff]
    %v139 = vld [vmem:[#allocation2 + $0x148] sm:$0xff]
    %v140 = vld [vmem:[#allocation2 + $0x150] sm:$0xff]
    %v141 = vld [vmem:[#allocation2 + $0x158] sm:$0xff]
    %v142 = vld [vmem:[#allocation2 + $0x160] sm:$0xff]
    %v143 = vld [vmem:[#allocation2 + $0x168] sm:$0xff]
    %v144 = vld [vmem:[#allocation2 + $0x170] sm:$0xff]
    %v145 = vld [vmem:[#allocation2 + $0x178] sm:$0xff]
    %v146 = vld [vmem:[#allocation2 + $0x180] sm:$0xff]
    %v147 = vld [vmem:[#allocation2 + $0x188] sm:$0xff]
    %v148 = vld [vmem:[#allocation2 + $0x190] sm:$0xff]
    %v149 = vld [vmem:[#allocation2 + $0x198] sm:$0xff]
    %v150 = vld [vmem:[#allocation2 + $0x1a0] sm:$0xff]
    %v151 = vld [vmem:[#allocation2 + $0x1a8] sm:$0xff]
    %v152 = vld [vmem:[#allocation2 + $0x1b0] sm:$0xff]
    %v153 = vld [vmem:[#allocation2 + $0x1b8] sm:$0xff]
    %v154 = vld [vmem:[#allocation2 + $0x1c0] sm:$0xff]
    %v155 = vld [vmem:[#allocation2 + $0x1c8] sm:$0xff]
    %v156 = vld [vmem:[#allocation2 + $0x1d0] sm:$0xff]
    %v157 = vld [vmem:[#allocation2 + $0x1d8] sm:$0xff]
    %v158 = vld [vmem:[#allocation2 + $0x1e0] sm:$0xff]
    %v159 = vld [vmem:[#allocation2 + $0x1e8] sm:$0xff]
    %v160 = vld [vmem:[#allocation2 + $0x1f0] sm:$0xff]
    %v161 = vld [vmem:[#allocation2 + $0x1f8] sm:$0xff]
    %v162 = vld [vmem:[#allocation5] sm:$0x1]
    %v164 = vlaneseq
    %v165 = vshrl.u32 %v164, 7
    %v166 = vsub.s32 0, %v165
    %v167 = vrot.slane %v162, %v166
    %v169 = vmul.f32 %v98, %v167
    %v170 = vmul.f32 %v99, %v167
    %v171 = vmul.f32 %v100, %v167
    %v172 = vmul.f32 %v101, %v167
    %v173 = vmul.f32 %v102, %v167
    %v174 = vmul.f32 %v103, %v167
    %v175 = vmul.f32 %v104, %v167
    %v176 = vmul.f32 %v105, %v167
    %v177 = vmul.f32 %v106, %v167
    %v178 = vmul.f32 %v107, %v167
    %v179 = vmul.f32 %v108, %v167
    %v180 = vmul.f32 %v109, %v167
    %v181 = vmul.f32 %v110, %v167
    %v182 = vmul.f32 %v111, %v167
    %v183 = vmul.f32 %v112, %v167
    %v184 = vmul.f32 %v113, %v167
    %v185 = vmul.f32 %v114, %v167
    %v186 = vmul.f32 %v115, %v167
    %v187 = vmul.f32 %v116, %v167
    %v188 = vmul.f32 %v117, %v167
    %v189 = vmul.f32 %v118, %v167
    %v190 = vmul.f32 %v119, %v167
    %v191 = vmul.f32 %v120, %v167
    %v192 = vmul.f32 %v121, %v167
    %v193 = vmul.f32 %v122, %v167
    %v194 = vmul.f32 %v123, %v167
    %v195 = vmul.f32 %v124, %v167
    %v196 = vmul.f32 %v125, %v167
    %v197 = vmul.f32 %v126, %v167
    %v198 = vmul.f32 %v127, %v167
    %v199 = vmul.f32 %v128, %v167
    %v200 = vmul.f32 %v129, %v167
    %v201 = vmul.f32 %v130, %v167
    %v202 = vmul.f32 %v131, %v167
    %v203 = vmul.f32 %v132, %v167
    %v204 = vmul.f32 %v133, %v167
    %v205 = vmul.f32 %v134, %v167
    %v206 = vmul.f32 %v135, %v167
    %v207 = vmul.f32 %v136, %v167
    %v208 = vmul.f32 %v137, %v167
    %v209 = vmul.f32 %v138, %v167
    %v210 = vmul.f32 %v139, %v167
    %v211 = vmul.f32 %v140, %v167
    %v212 = vmul.f32 %v141, %v167
    %v213 = vmul.f32 %v142, %v167
    %v214 = vmul.f32 %v143, %v167
    %v215 = vmul.f32 %v144, %v167
    %v216 = vmul.f32 %v145, %v167
    %v217 = vmul.f32 %v146, %v167
    %v218 = vmul.f32 %v147, %v167
    %v219 = vmul.f32 %v148, %v167
    %v220 = vmul.f32 %v149, %v167
    %v221 = vmul.f32 %v150, %v167
    %v222 = vmul.f32 %v151, %v167
    %v223 = vmul.f32 %v152, %v167
    %v224 = vmul.f32 %v153, %v167
    %v225 = vmul.f32 %v154, %v167
    %v226 = vmul.f32 %v155, %v167
    %v227 = vmul.f32 %v156, %v167
    %v228 = vmul.f32 %v157, %v167
    %v229 = vmul.f32 %v158, %v167
    %v230 = vmul.f32 %v159, %v167
    %v231 = vmul.f32 %v160, %v167
    %v232 = vmul.f32 %v161, %v167
    %v233 = vld [vmem:[#allocation7] sm:$0x1]
    %v235 = vlaneseq
    %v236 = vshrl.u32 %v235, 7
    %v237 = vsub.s32 0, %v236
    %v238 = vrot.slane %v233, %v237
    %v240 = vadd.f32 %v169, %v238
    %v241 = vadd.f32 %v170, %v238
    %v242 = vadd.f32 %v171, %v238
    %v243 = vadd.f32 %v172, %v238
    %v244 = vadd.f32 %v173, %v238
    %v245 = vadd.f32 %v174, %v238
    %v246 = vadd.f32 %v175, %v238
    %v247 = vadd.f32 %v176, %v238
    %v248 = vadd.f32 %v177, %v238
    %v249 = vadd.f32 %v178, %v238
    %v250 = vadd.f32 %v179, %v238
    %v251 = vadd.f32 %v180, %v238
    %v252 = vadd.f32 %v181, %v238
    %v253 = vadd.f32 %v182, %v238
    %v254 = vadd.f32 %v183, %v238
    %v255 = vadd.f32 %v184, %v238
    %v256 = vadd.f32 %v185, %v238
    %v257 = vadd.f32 %v186, %v238
    %v258 = vadd.f32 %v187, %v238
    %v259 = vadd.f32 %v188, %v238
    %v260 = vadd.f32 %v189, %v238
    %v261 = vadd.f32 %v190, %v238
    %v262 = vadd.f32 %v191, %v238
    %v263 = vadd.f32 %v192, %v238
    %v264 = vadd.f32 %v193, %v238
    %v265 = vadd.f32 %v194, %v238
    %v266 = vadd.f32 %v195, %v238
    %v267 = vadd.f32 %v196, %v238
    %v268 = vadd.f32 %v197, %v238
    %v269 = vadd.f32 %v198, %v238
    %v270 = vadd.f32 %v199, %v238
    %v271 = vadd.f32 %v200, %v238
    %v272 = vadd.f32 %v201, %v238
    %v273 = vadd.f32 %v202, %v238
    %v274 = vadd.f32 %v203, %v238
    %v275 = vadd.f32 %v204, %v238
    %v276 = vadd.f32 %v205, %v238
    %v277 = vadd.f32 %v206, %v238
    %v278 = vadd.f32 %v207, %v238
    %v279 = vadd.f32 %v208, %v238
    %v280 = vadd.f32 %v209, %v238
    %v281 = vadd.f32 %v210, %v238
    %v282 = vadd.f32 %v211, %v238
    %v283 = vadd.f32 %v212, %v238
    %v284 = vadd.f32 %v213, %v238
    %v285 = vadd.f32 %v214, %v238
    %v286 = vadd.f32 %v215, %v238
    %v287 = vadd.f32 %v216, %v238
    %v288 = vadd.f32 %v217, %v238
    %v289 = vadd.f32 %v218, %v238
    %v290 = vadd.f32 %v219, %v238
    %v291 = vadd.f32 %v220, %v238
    %v292 = vadd.f32 %v221, %v238
    %v293 = vadd.f32 %v222, %v238
    %v294 = vadd.f32 %v223, %v238
    %v295 = vadd.f32 %v224, %v238
    %v296 = vadd.f32 %v225, %v238
    %v297 = vadd.f32 %v226, %v238
    %v298 = vadd.f32 %v227, %v238
    %v299 = vadd.f32 %v228, %v238
    %v300 = vadd.f32 %v229, %v238
    %v301 = vadd.f32 %v230, %v238
    %v302 = vadd.f32 %v231, %v238
    %v303 = vadd.f32 %v232, %v238
    %v304 = vld [vmem:[#allocation8] sm:$0xff]
    %v305 = vld [vmem:[#allocation8 + $0x8] sm:$0xff]
    %v306 = vld [vmem:[#allocation8 + $0x10] sm:$0xff]
    %v307 = vld [vmem:[#allocation8 + $0x18] sm:$0xff]
    %v308 = vld [vmem:[#allocation8 + $0x20] sm:$0xff]
    %v309 = vld [vmem:[#allocation8 + $0x28] sm:$0xff]
    %v310 = vld [vmem:[#allocation8 + $0x30] sm:$0xff]
    %v311 = vld [vmem:[#allocation8 + $0x38] sm:$0xff]
    %v312 = vld [vmem:[#allocation8 + $0x40] sm:$0xff]
    %v313 = vld [vmem:[#allocation8 + $0x48] sm:$0xff]
    %v314 = vld [vmem:[#allocation8 + $0x50] sm:$0xff]
    %v315 = vld [vmem:[#allocation8 + $0x58] sm:$0xff]
    %v316 = vld [vmem:[#allocation8 + $0x60] sm:$0xff]
    %v317 = vld [vmem:[#allocation8 + $0x68] sm:$0xff]
    %v318 = vld [vmem:[#allocation8 + $0x70] sm:$0xff]
    %v319 = vld [vmem:[#allocation8 + $0x78] sm:$0xff]
    %v320 = vld [vmem:[#allocation8 + $0x80] sm:$0xff]
    %v321 = vld [vmem:[#allocation8 + $0x88] sm:$0xff]
    %v322 = vld [vmem:[#allocation8 + $0x90] sm:$0xff]
    %v323 = vld [vmem:[#allocation8 + $0x98] sm:$0xff]
    %v324 = vld [vmem:[#allocation8 + $0xa0] sm:$0xff]
    %v325 = vld [vmem:[#allocation8 + $0xa8] sm:$0xff]
    %v326 = vld [vmem:[#allocation8 + $0xb0] sm:$0xff]
    %v327 = vld [vmem:[#allocation8 + $0xb8] sm:$0xff]
    %v328 = vld [vmem:[#allocation8 + $0xc0] sm:$0xff]
    %v329 = vld [vmem:[#allocation8 + $0xc8] sm:$0xff]
    %v330 = vld [vmem:[#allocation8 + $0xd0] sm:$0xff]
    %v331 = vld [vmem:[#allocation8 + $0xd8] sm:$0xff]
    %v332 = vld [vmem:[#allocation8 + $0xe0] sm:$0xff]
    %v333 = vld [vmem:[#allocation8 + $0xe8] sm:$0xff]
    %v334 = vld [vmem:[#allocation8 + $0xf0] sm:$0xff]
    %v335 = vld [vmem:[#allocation8 + $0xf8] sm:$0xff]
    %v336 = vld [vmem:[#allocation8 + $0x100] sm:$0xff]
    %v337 = vld [vmem:[#allocation8 + $0x108] sm:$0xff]
    %v338 = vld [vmem:[#allocation8 + $0x110] sm:$0xff]
    %v339 = vld [vmem:[#allocation8 + $0x118] sm:$0xff]
    %v340 = vld [vmem:[#allocation8 + $0x120] sm:$0xff]
    %v341 = vld [vmem:[#allocation8 + $0x128] sm:$0xff]
    %v342 = vld [vmem:[#allocation8 + $0x130] sm:$0xff]
    %v343 = vld [vmem:[#allocation8 + $0x138] sm:$0xff]
    %v344 = vld [vmem:[#allocation8 + $0x140] sm:$0xff]
    %v345 = vld [vmem:[#allocation8 + $0x148] sm:$0xff]
    %v346 = vld [vmem:[#allocation8 + $0x150] sm:$0xff]
    %v347 = vld [vmem:[#allocation8 + $0x158] sm:$0xff]
    %v348 = vld [vmem:[#allocation8 + $0x160] sm:$0xff]
    %v349 = vld [vmem:[#allocation8 + $0x168] sm:$0xff]
    %v350 = vld [vmem:[#allocation8 + $0x170] sm:$0xff]
    %v351 = vld [vmem:[#allocation8 + $0x178] sm:$0xff]
    %v352 = vld [vmem:[#allocation8 + $0x180] sm:$0xff]
    %v353 = vld [vmem:[#allocation8 + $0x188] sm:$0xff]
    %v354 = vld [vmem:[#allocation8 + $0x190] sm:$0xff]
    %v355 = vld [vmem:[#allocation8 + $0x198] sm:$0xff]
    %v356 = vld [vmem:[#allocation8 + $0x1a0] sm:$0xff]
    %v357 = vld [vmem:[#allocation8 + $0x1a8] sm:$0xff]
    %v358 = vld [vmem:[#allocation8 + $0x1b0] sm:$0xff]
    %v359 = vld [vmem:[#allocation8 + $0x1b8] sm:$0xff]
    %v360 = vld [vmem:[#allocation8 + $0x1c0] sm:$0xff]
    %v361 = vld [vmem:[#allocation8 + $0x1c8] sm:$0xff]
    %v362 = vld [vmem:[#allocation8 + $0x1d0] sm:$0xff]
    %v363 = vld [vmem:[#allocation8 + $0x1d8] sm:$0xff]
    %v364 = vld [vmem:[#allocation8 + $0x1e0] sm:$0xff]
    %v365 = vld [vmem:[#allocation8 + $0x1e8] sm:$0xff]
    %v366 = vld [vmem:[#allocation8 + $0x1f0] sm:$0xff]
    %v367 = vld [vmem:[#allocation8 + $0x1f8] sm:$0xff]
    %v368 = vld [vmem:[#allocation10] sm:$0x1]
    %v370 = vlaneseq
    %v371 = vshrl.u32 %v370, 7
    %v372 = vsub.s32 0, %v371
    %v373 = vrot.slane %v368, %v372
    %v375 = vmul.f32 %v304, %v373
    %v376 = vmul.f32 %v305, %v373
    %v377 = vmul.f32 %v306, %v373
    %v378 = vmul.f32 %v307, %v373
    %v379 = vmul.f32 %v308, %v373
    %v380 = vmul.f32 %v309, %v373
    %v381 = vmul.f32 %v310, %v373
    %v382 = vmul.f32 %v311, %v373
    %v383 = vmul.f32 %v312, %v373
    %v384 = vmul.f32 %v313, %v373
    %v385 = vmul.f32 %v314, %v373
    %v386 = vmul.f32 %v315, %v373
    %v387 = vmul.f32 %v316, %v373
    %v388 = vmul.f32 %v317, %v373
    %v389 = vmul.f32 %v318, %v373
    %v390 = vmul.f32 %v319, %v373
    %v391 = vmul.f32 %v320, %v373
    %v392 = vmul.f32 %v321, %v373
    %v393 = vmul.f32 %v322, %v373
    %v394 = vmul.f32 %v323, %v373
    %v395 = vmul.f32 %v324, %v373
    %v396 = vmul.f32 %v325, %v373
    %v397 = vmul.f32 %v326, %v373
    %v398 = vmul.f32 %v327, %v373
    %v399 = vmul.f32 %v328, %v373
    %v400 = vmul.f32 %v329, %v373
    %v401 = vmul.f32 %v330, %v373
    %v402 = vmul.f32 %v331, %v373
    %v403 = vmul.f32 %v332, %v373
    %v404 = vmul.f32 %v333, %v373
    %v405 = vmul.f32 %v334, %v373
    %v406 = vmul.f32 %v335, %v373
    %v407 = vmul.f32 %v336, %v373
    %v408 = vmul.f32 %v337, %v373
    %v409 = vmul.f32 %v338, %v373
    %v410 = vmul.f32 %v339, %v373
    %v411 = vmul.f32 %v340, %v373
    %v412 = vmul.f32 %v341, %v373
    %v413 = vmul.f32 %v342, %v373
    %v414 = vmul.f32 %v343, %v373
    %v415 = vmul.f32 %v344, %v373
    %v416 = vmul.f32 %v345, %v373
    %v417 = vmul.f32 %v346, %v373
    %v418 = vmul.f32 %v347, %v373
    %v419 = vmul.f32 %v348, %v373
    %v420 = vmul.f32 %v349, %v373
    %v421 = vmul.f32 %v350, %v373
    %v422 = vmul.f32 %v351, %v373
    %v423 = vmul.f32 %v352, %v373
    %v424 = vmul.f32 %v353, %v373
    %v425 = vmul.f32 %v354, %v373
    %v426 = vmul.f32 %v355, %v373
    %v427 = vmul.f32 %v356, %v373
    %v428 = vmul.f32 %v357, %v373
    %v429 = vmul.f32 %v358, %v373
    %v430 = vmul.f32 %v359, %v373
    %v431 = vmul.f32 %v360, %v373
    %v432 = vmul.f32 %v361, %v373
    %v433 = vmul.f32 %v362, %v373
    %v434 = vmul.f32 %v363, %v373
    %v435 = vmul.f32 %v364, %v373
    %v436 = vmul.f32 %v365, %v373
    %v437 = vmul.f32 %v366, %v373
    %v438 = vmul.f32 %v367, %v373
    %v439 = vld [vmem:[#allocation11] sm:$0x1]
    %v441 = vlaneseq
    %v442 = vshrl.u32 %v441, 7
    %v443 = vsub.s32 0, %v442
    %v444 = vrot.slane %v439, %v443
    %v446 = vadd.f32 %v375, %v444
    %v447 = vadd.f32 %v376, %v444
    %v448 = vadd.f32 %v377, %v444
    %v449 = vadd.f32 %v378, %v444
    %v450 = vadd.f32 %v379, %v444
    %v451 = vadd.f32 %v380, %v444
    %v452 = vadd.f32 %v381, %v444
    %v453 = vadd.f32 %v382, %v444
    %v454 = vadd.f32 %v383, %v444
    %v455 = vadd.f32 %v384, %v444
    %v456 = vadd.f32 %v385, %v444
    %v457 = vadd.f32 %v386, %v444
    %v458 = vadd.f32 %v387, %v444
    %v459 = vadd.f32 %v388, %v444
    %v460 = vadd.f32 %v389, %v444
    %v461 = vadd.f32 %v390, %v444
    %v462 = vadd.f32 %v391, %v444
    %v463 = vadd.f32 %v392, %v444
    %v464 = vadd.f32 %v393, %v444
    %v465 = vadd.f32 %v394, %v444
    %v466 = vadd.f32 %v395, %v444
    %v467 = vadd.f32 %v396, %v444
    %v468 = vadd.f32 %v397, %v444
    %v469 = vadd.f32 %v398, %v444
    %v470 = vadd.f32 %v399, %v444
    %v471 = vadd.f32 %v400, %v444
    %v472 = vadd.f32 %v401, %v444
    %v473 = vadd.f32 %v402, %v444
    %v474 = vadd.f32 %v403, %v444
    %v475 = vadd.f32 %v404, %v444
    %v476 = vadd.f32 %v405, %v444
    %v477 = vadd.f32 %v406, %v444
    %v478 = vadd.f32 %v407, %v444
    %v479 = vadd.f32 %v408, %v444
    %v480 = vadd.f32 %v409, %v444
    %v481 = vadd.f32 %v410, %v444
    %v482 = vadd.f32 %v411, %v444
    %v483 = vadd.f32 %v412, %v444
    %v484 = vadd.f32 %v413, %v444
    %v485 = vadd.f32 %v414, %v444
    %v486 = vadd.f32 %v415, %v444
    %v487 = vadd.f32 %v416, %v444
    %v488 = vadd.f32 %v417, %v444
    %v489 = vadd.f32 %v418, %v444
    %v490 = vadd.f32 %v419, %v444
    %v491 = vadd.f32 %v420, %v444
    %v492 = vadd.f32 %v421, %v444
    %v493 = vadd.f32 %v422, %v444
    %v494 = vadd.f32 %v423, %v444
    %v495 = vadd.f32 %v424, %v444
    %v496 = vadd.f32 %v425, %v444
    %v497 = vadd.f32 %v426, %v444
    %v498 = vadd.f32 %v427, %v444
    %v499 = vadd.f32 %v428, %v444
    %v500 = vadd.f32 %v429, %v444
    %v501 = vadd.f32 %v430, %v444
    %v502 = vadd.f32 %v431, %v444
    %v503 = vadd.f32 %v432, %v444
    %v504 = vadd.f32 %v433, %v444
    %v505 = vadd.f32 %v434, %v444
    %v506 = vadd.f32 %v435, %v444
    %v507 = vadd.f32 %v436, %v444
    %v508 = vadd.f32 %v437, %v444
    %v509 = vadd.f32 %v438, %v444
    %v510 = vadd.f32 %v240, %v446
    %v511 = vadd.f32 %v241, %v447
    %v512 = vadd.f32 %v242, %v448
    %v513 = vadd.f32 %v243, %v449
    %v514 = vadd.f32 %v244, %v450
    %v515 = vadd.f32 %v245, %v451
    %v516 = vadd.f32 %v246, %v452
    %v517 = vadd.f32 %v247, %v453
    %v518 = vadd.f32 %v248, %v454
    %v519 = vadd.f32 %v249, %v455
    %v520 = vadd.f32 %v250, %v456
    %v521 = vadd.f32 %v251, %v457
    %v522 = vadd.f32 %v252, %v458
    %v523 = vadd.f32 %v253, %v459
    %v524 = vadd.f32 %v254, %v460
    %v525 = vadd.f32 %v255, %v461
    %v526 = vadd.f32 %v256, %v462
    %v527 = vadd.f32 %v257, %v463
    %v528 = vadd.f32 %v258, %v464
    %v529 = vadd.f32 %v259, %v465
    %v530 = vadd.f32 %v260, %v466
    %v531 = vadd.f32 %v261, %v467
    %v532 = vadd.f32 %v262, %v468
    %v533 = vadd.f32 %v263, %v469
    %v534 = vadd.f32 %v264, %v470
    %v535 = vadd.f32 %v265, %v471
    %v536 = vadd.f32 %v266, %v472
    %v537 = vadd.f32 %v267, %v473
    %v538 = vadd.f32 %v268, %v474
    %v539 = vadd.f32 %v269, %v475
    %v540 = vadd.f32 %v270, %v476
    %v541 = vadd.f32 %v271, %v477
    %v542 = vadd.f32 %v272, %v478
    %v543 = vadd.f32 %v273, %v479
    %v544 = vadd.f32 %v274, %v480
    %v545 = vadd.f32 %v275, %v481
    %v546 = vadd.f32 %v276, %v482
    %v547 = vadd.f32 %v277, %v483
    %v548 = vadd.f32 %v278, %v484
    %v549 = vadd.f32 %v279, %v485
    %v550 = vadd.f32 %v280, %v486
    %v551 = vadd.f32 %v281, %v487
    %v552 = vadd.f32 %v282, %v488
    %v553 = vadd.f32 %v283, %v489
    %v554 = vadd.f32 %v284, %v490
    %v555 = vadd.f32 %v285, %v491
    %v556 = vadd.f32 %v286, %v492
    %v557 = vadd.f32 %v287, %v493
    %v558 = vadd.f32 %v288, %v494
    %v559 = vadd.f32 %v289, %v495
    %v560 = vadd.f32 %v290, %v496
    %v561 = vadd.f32 %v291, %v497
    %v562 = vadd.f32 %v292, %v498
    %v563 = vadd.f32 %v293, %v499
    %v564 = vadd.f32 %v294, %v500
    %v565 = vadd.f32 %v295, %v501
    %v566 = vadd.f32 %v296, %v502
    %v567 = vadd.f32 %v297, %v503
    %v568 = vadd.f32 %v298, %v504
    %v569 = vadd.f32 %v299, %v505
    %v570 = vadd.f32 %v300, %v506
    %v571 = vadd.f32 %v301, %v507
    %v572 = vadd.f32 %v302, %v508
    %v573 = vadd.f32 %v303, %v509
    %v574 = vmax.f32 %v510, 0.0
    %v575 = vmax.f32 %v511, 0.0
    %v576 = vmax.f32 %v512, 0.0
    %v577 = vmax.f32 %v513, 0.0
    %v578 = vmax.f32 %v514, 0.0
    %v579 = vmax.f32 %v515, 0.0
    %v580 = vmax.f32 %v516, 0.0
    %v581 = vmax.f32 %v517, 0.0
    %v582 = vmax.f32 %v518, 0.0
    %v583 = vmax.f32 %v519, 0.0
    %v584 = vmax.f32 %v520, 0.0
    %v585 = vmax.f32 %v521, 0.0
    %v586 = vmax.f32 %v522, 0.0
    %v587 = vmax.f32 %v523, 0.0
    %v588 = vmax.f32 %v524, 0.0
    %v589 = vmax.f32 %v525, 0.0
    %v590 = vmax.f32 %v526, 0.0
    %v591 = vmax.f32 %v527, 0.0
    %v592 = vmax.f32 %v528, 0.0
    %v593 = vmax.f32 %v529, 0.0
    %v594 = vmax.f32 %v530, 0.0
    %v595 = vmax.f32 %v531, 0.0
    %v596 = vmax.f32 %v532, 0.0
    %v597 = vmax.f32 %v533, 0.0
    %v598 = vmax.f32 %v534, 0.0
    %v599 = vmax.f32 %v535, 0.0
    %v600 = vmax.f32 %v536, 0.0
    %v601 = vmax.f32 %v537, 0.0
    %v602 = vmax.f32 %v538, 0.0
    %v603 = vmax.f32 %v539, 0.0
    %v604 = vmax.f32 %v540, 0.0
    %v605 = vmax.f32 %v541, 0.0
    %v606 = vmax.f32 %v542, 0.0
    %v607 = vmax.f32 %v543, 0.0
    %v608 = vmax.f32 %v544, 0.0
    %v609 = vmax.f32 %v545, 0.0
    %v610 = vmax.f32 %v546, 0.0
    %v611 = vmax.f32 %v547, 0.0
    %v612 = vmax.f32 %v548, 0.0
    %v613 = vmax.f32 %v549, 0.0
    %v614 = vmax.f32 %v550, 0.0
    %v615 = vmax.f32 %v551, 0.0
    %v616 = vmax.f32 %v552, 0.0
    %v617 = vmax.f32 %v553, 0.0
    %v618 = vmax.f32 %v554, 0.0
    %v619 = vmax.f32 %v555, 0.0
    %v620 = vmax.f32 %v556, 0.0
    %v621 = vmax.f32 %v557, 0.0
    %v622 = vmax.f32 %v558, 0.0
    %v623 = vmax.f32 %v559, 0.0
    %v624 = vmax.f32 %v560, 0.0
    %v625 = vmax.f32 %v561, 0.0
    %v626 = vmax.f32 %v562, 0.0
    %v627 = vmax.f32 %v563, 0.0
    %v628 = vmax.f32 %v564, 0.0
    %v629 = vmax.f32 %v565, 0.0
    %v630 = vmax.f32 %v566, 0.0
    %v631 = vmax.f32 %v567, 0.0
    %v632 = vmax.f32 %v568, 0.0
    %v633 = vmax.f32 %v569, 0.0
    %v634 = vmax.f32 %v570, 0.0
    %v635 = vmax.f32 %v571, 0.0
    %v636 = vmax.f32 %v572, 0.0
    %v637 = vmax.f32 %v573, 0.0
    %638 = vst [vmem:[#allocation13] sm:$0xff] %v574
    %639 = vst [vmem:[#allocation13 + $0x8] sm:$0xff] %v575
    %640 = vst [vmem:[#allocation13 + $0x10] sm:$0xff] %v576
    %641 = vst [vmem:[#allocation13 + $0x18] sm:$0xff] %v577
    %642 = vst [vmem:[#allocation13 + $0x20] sm:$0xff] %v578
    %643 = vst [vmem:[#allocation13 + $0x28] sm:$0xff] %v579
    %644 = vst [vmem:[#allocation13 + $0x30] sm:$0xff] %v580
    %645 = vst [vmem:[#allocation13 + $0x38] sm:$0xff] %v581
    %646 = vst [vmem:[#allocation13 + $0x40] sm:$0xff] %v582
    %647 = vst [vmem:[#allocation13 + $0x48] sm:$0xff] %v583
    %648 = vst [vmem:[#allocation13 + $0x50] sm:$0xff] %v584
    %649 = vst [vmem:[#allocation13 + $0x58] sm:$0xff] %v585
    %650 = vst [vmem:[#allocation13 + $0x60] sm:$0xff] %v586
    %651 = vst [vmem:[#allocation13 + $0x68] sm:$0xff] %v587
    %652 = vst [vmem:[#allocation13 + $0x70] sm:$0xff] %v588
    %653 = vst [vmem:[#allocation13 + $0x78] sm:$0xff] %v589
    %654 = vst [vmem:[#allocation13 + $0x80] sm:$0xff] %v590
    %655 = vst [vmem:[#allocation13 + $0x88] sm:$0xff] %v591
    %656 = vst [vmem:[#allocation13 + $0x90] sm:$0xff] %v592
    %657 = vst [vmem:[#allocation13 + $0x98] sm:$0xff] %v593
    %658 = vst [vmem:[#allocation13 + $0xa0] sm:$0xff] %v594
    %659 = vst [vmem:[#allocation13 + $0xa8] sm:$0xff] %v595
    %660 = vst [vmem:[#allocation13 + $0xb0] sm:$0xff] %v596
    %661 = vst [vmem:[#allocation13 + $0xb8] sm:$0xff] %v597
    %662 = vst [vmem:[#allocation13 + $0xc0] sm:$0xff] %v598
    %663 = vst [vmem:[#allocation13 + $0xc8] sm:$0xff] %v599
    %664 = vst [vmem:[#allocation13 + $0xd0] sm:$0xff] %v600
    %665 = vst [vmem:[#allocation13 + $0xd8] sm:$0xff] %v601
    %666 = vst [vmem:[#allocation13 + $0xe0] sm:$0xff] %v602
    %667 = vst [vmem:[#allocation13 + $0xe8] sm:$0xff] %v603
    %668 = vst [vmem:[#allocation13 + $0xf0] sm:$0xff] %v604
    %669 = vst [vmem:[#allocation13 + $0xf8] sm:$0xff] %v605
    %670 = vst [vmem:[#allocation13 + $0x100] sm:$0xff] %v606
    %671 = vst [vmem:[#allocation13 + $0x108] sm:$0xff] %v607
    %672 = vst [vmem:[#allocation13 + $0x110] sm:$0xff] %v608
    %673 = vst [vmem:[#allocation13 + $0x118] sm:$0xff] %v609
    %674 = vst [vmem:[#allocation13 + $0x120] sm:$0xff] %v610
    %675 = vst [vmem:[#allocation13 + $0x128] sm:$0xff] %v611
    %676 = vst [vmem:[#allocation13 + $0x130] sm:$0xff] %v612
    %677 = vst [vmem:[#allocation13 + $0x138] sm:$0xff] %v613
    %678 = vst [vmem:[#allocation13 + $0x140] sm:$0xff] %v614
    %679 = vst [vmem:[#allocation13 + $0x148] sm:$0xff] %v615
    %680 = vst [vmem:[#allocation13 + $0x150] sm:$0xff] %v616
    %681 = vst [vmem:[#allocation13 + $0x158] sm:$0xff] %v617
    %682 = vst [vmem:[#allocation13 + $0x160] sm:$0xff] %v618
    %683 = vst [vmem:[#allocation13 + $0x168] sm:$0xff] %v619
    %684 = vst [vmem:[#allocation13 + $0x170] sm:$0xff] %v620
    %685 = vst [vmem:[#allocation13 + $0x178] sm:$0xff] %v621
    %686 = vst [vmem:[#allocation13 + $0x180] sm:$0xff] %v622
    %687 = vst [vmem:[#allocation13 + $0x188] sm:$0xff] %v623
    %688 = vst [vmem:[#allocation13 + $0x190] sm:$0xff] %v624
    %689 = vst [vmem:[#allocation13 + $0x198] sm:$0xff] %v625
    %690 = vst [vmem:[#allocation13 + $0x1a0] sm:$0xff] %v626
    %691 = vst [vmem:[#allocation13 + $0x1a8] sm:$0xff] %v627
    %692 = vst [vmem:[#allocation13 + $0x1b0] sm:$0xff] %v628
    %693 = vst [vmem:[#allocation13 + $0x1b8] sm:$0xff] %v629
    %694 = vst [vmem:[#allocation13 + $0x1c0] sm:$0xff] %v630
    %695 = vst [vmem:[#allocation13 + $0x1c8] sm:$0xff] %v631
    %696 = vst [vmem:[#allocation13 + $0x1d0] sm:$0xff] %v632
    %697 = vst [vmem:[#allocation13 + $0x1d8] sm:$0xff] %v633
    %698 = vst [vmem:[#allocation13 + $0x1e0] sm:$0xff] %v634
    %699 = vst [vmem:[#allocation13 + $0x1e8] sm:$0xff] %v635
    %700 = vst [vmem:[#allocation13 + $0x1f0] sm:$0xff] %v636
    %701 = vst [vmem:[#allocation13 + $0x1f8] sm:$0xff] %v637
    // Predicated region
    $region50: #{basic_block_std.7} parent=1 // pred_check
      _
    $region51: #{basic_block_std.7} parent=1 // pred_check_branch
      %703 = sbr.rel (0) target = $region53
    $region52: #{basic_block_std.7} parent=1 // pred_region
      %s705 = ssub.s32 8192, 8192
      %706 = vsyncadd [#allocation4], %s705
      %s707 = sshll.u32 [#allocation13], 4
      %s708 = int_to_ptr.vmem [resolvable:$true] %s707
      %713 = dma.vmem_to_hbm [thread:$0]  %s708, 8192, %s6, [#allocation4], 128, 128, 8
    $region53: #{basic_block_std.7} parent=1 // pred_fallthru
      _
    // Predicated region
    $region54: #{basic_block_std.7} parent=1 // pred_check
      _
    $region55: #{basic_block_std.7} parent=1 // pred_check_branch
      %715 = sbr.rel (0) target = $region57
    $region56: #{basic_block_std.7} parent=1 // pred_region
      %716 = dma.done [#allocation4], 8192
    $region57: #{basic_block_std.7} parent=1 // pred_fallthru
      _
    %717 = vsyncpa [#allocation3], 1
    %718 = vsyncpa [#allocation6], 1
    %719 = vsyncpa [#allocation9], 1
    %720 = vsyncpa [#allocation12], 1
    %721 = vsyncpa [#allocation4], 1

</llo_original>
